<compile_context>
chip_gen: v7x
topology: tpu7x:2x2x1
jax: 0.10.0
libtpu: 0.0.40
codegen_flags: <defaults>
</compile_context>

<pallas_src>
import functools

import jax
import jax.numpy as jnp
from jax import lax
from jax.experimental import pallas as pl
from jax.experimental.pallas import tpu as pltpu


# ------------------------------ kernel ------------------------------------- #

def _reflect_pad_2d(x, pad):
    """Reflection-pad a (C, H, W) value by `pad` on both spatial dims (in VMEM)."""
    if pad == 0:
        return x
    C, H, W = x.shape
    top = [x[:, p:p + 1, :] for p in range(pad, 0, -1)]          # rows pad .. 1
    bot = [x[:, H - 2 - p:H - 1 - p, :] for p in range(pad)]     # rows H-2, H-3, ...
    xh = jnp.concatenate(top + [x] + bot, axis=1)                # (C, H+2p, W)
    left = [xh[:, :, p:p + 1] for p in range(pad, 0, -1)]
    right = [xh[:, :, W - 2 - p:W - 1 - p] for p in range(pad)]
    return jnp.concatenate(left + [xh] + right, axis=2)          # (C, H+2p, W+2p)


def _conv_kernel(x_ref, w_ref, b_ref, o_ref, *,
                 kernel_size, stride, pad, h_out, w_out, compute_dtype):
    # x_ref: (1, Cin, H, W)     w_ref: (Cout, K*K*Cin)     b_ref: (Cout, 1)
    # o_ref: (1, Cout, h_out*w_out)   (NCHW-flat, lane-dense last dim)
    x = x_ref[0]                                   # (Cin, H, W)
    cin = x.shape[0]
    xp = _reflect_pad_2d(x.astype(jnp.float32), pad)   # (Cin, Hp, Wp)

    k = kernel_size
    taps = []
    for dy in range(k):
        for dx in range(k):
            if stride == 1:
                t = xp[:, dy:dy + h_out, dx:dx + w_out]
            else:
                # TODO(synk): stride>1 path relies on Mosaic strided-slice lowering;
                # the demo below exercises stride=1 only.
                t = lax.slice(
                    xp,
                    (0, dy, dx),
                    (cin, dy + (h_out - 1) * stride + 1, dx + (w_out - 1) * stride + 1),
                    (1, stride, stride))
            taps.append(t)                          # (Cin, h_out, w_out)

    # One stack + one reshape (single relayout) instead of 9 slice+reshape copies.
    cols = jnp.concatenate(taps, axis=0)            # (K*K*Cin, h_out, w_out)
    cols = cols.reshape(k * k * cin, h_out * w_out)

    wmat = w_ref[...]
    if compute_dtype is not None:                   # optional bf16 matmul (v6e/v7x)
        cols = cols.astype(compute_dtype)
        wmat = wmat.astype(compute_dtype)

    # Single MXU matmul: (Cout, K*K*Cin) x (K*K*Cin, Hout*Wout), f32 accumulation.
    y = jnp.dot(wmat, cols, preferred_element_type=jnp.float32)
    y = y + b_ref[...]                              # (Cout, 1) broadcast bias
    o_ref[0] = y.astype(o_ref.dtype)


# ------------------------------ wrapper ------------------------------------ #

def conv_layer_forward(x_nchw, params, *, kernel_size, stride, compute_dtype=None):
    """ConvLayer forward: reflection-pad(k//2) + Conv2d(k, stride). Input/output NCHW."""
    N, Cin, H, W = x_nchw.shape
    pad = kernel_size // 2
    h_out = (H + 2 * pad - kernel_size) // stride + 1
    w_out = (W + 2 * pad - kernel_size) // stride + 1

    w_mat = params["w_mat"]                         # (Cout, K*K*Cin)
    Cout = w_mat.shape[0]
    b_col = params["b"].reshape(Cout, 1)

    kernel = functools.partial(
        _conv_kernel, kernel_size=kernel_size, stride=stride, pad=pad,
        h_out=h_out, w_out=w_out, compute_dtype=compute_dtype)

    out_flat = pl.pallas_call(
        kernel,
        out_shape=jax.ShapeDtypeStruct((N, Cout, h_out * w_out), x_nchw.dtype),
        grid_spec=pltpu.PrefetchScalarGridSpec(
            num_scalar_prefetch=0,
            grid=(N,),
            in_specs=[
                pl.BlockSpec((1, Cin, H, W), lambda n: (n, 0, 0, 0)),
                pl.BlockSpec((Cout, kernel_size * kernel_size * Cin),
                             lambda n: (0, 0)),
                pl.BlockSpec((Cout, 1), lambda n: (0, 0)),
            ],
            out_specs=pl.BlockSpec((1, Cout, h_out * w_out), lambda n: (n, 0, 0)),
        ),
        compiler_params=pltpu.CompilerParams(
            dimension_semantics=("parallel",),
            vmem_limit_bytes=32 * 1024 * 1024,
        ),
    )(x_nchw, w_mat, b_col)

    # Free contiguous reshape back to NCHW (no transpose, no extra HBM pass).
    return out_flat.reshape(N, Cout, h_out, w_out)


# --------------------------- params / reference ----------------------------- #

def init_params(key, in_channels, out_channels, kernel_size):
    """PyTorch Conv2d default init; weight pre-reshaped once for the im2col matmul."""
    kw, kb = jax.random.split(key)
    fan_in = in_channels * kernel_size * kernel_size
    bound = 1.0 / (fan_in ** 0.5)
    w_oihw = jax.random.uniform(
        kw, (out_channels, in_channels, kernel_size, kernel_size),
        jnp.float32, -bound, bound)
    b = jax.random.uniform(kb, (out_channels,), jnp.float32, -bound, bound)
    # (Cout, Cin, K, K) -> (Cout, K, K, Cin) -> (Cout, K*K*Cin); column order matches
    # the kernel's tap stacking: index = (dy*K + dx) * Cin + ci.
    w_mat = jnp.transpose(w_oihw, (0, 2, 3, 1)).reshape(out_channels, -1)
    return {"w_oihw": w_oihw, "w_mat": w_mat, "b": b}


def _reference_forward(x_nchw, params, *, kernel_size, stride):
    pad = kernel_size // 2
    xp = jnp.pad(x_nchw, ((0, 0), (0, 0), (pad, pad), (pad, pad)), mode="reflect")
    y = lax.conv_general_dilated(
        xp, params["w_oihw"], (stride, stride), "VALID",
        dimension_numbers=("NCHW", "OIHW", "NCHW"))
    return y + params["b"].reshape(1, -1, 1, 1)


# --------------------------------- main ------------------------------------- #

if __name__ == "__main__":
    key = jax.random.PRNGKey(0)
    kx, kp = jax.random.split(key)

    N, Cin, H, W = 2, 4, 16, 16
    Cout, K, stride = 8, 3, 1

    x = jax.random.normal(kx, (N, Cin, H, W), jnp.float32)
    params = init_params(kp, Cin, Cout, K)

    out = conv_layer_forward(x, params, kernel_size=K, stride=stride)
    out = jax.block_until_ready(out)

    ref = _reference_forward(x, params, kernel_size=K, stride=stride)
    assert out.shape == ref.shape == (N, Cout, H, W)
    assert jnp.allclose(out, ref, atol=1e-4, rtol=1e-4), "mismatch vs lax.conv reference"

    print("KERNEL_OK")
</pallas_src>

<mosaic_0001>
module attributes {stable_mosaic.version = 11 : i64} {
  func.func @_conv_kernel(%arg0: i32, %arg1: memref<1x4x16x16xf32, #tpu.memory_space<vmem>>, %arg2: memref<8x36xf32, #tpu.memory_space<vmem>>, %arg3: memref<8x1xf32, #tpu.memory_space<vmem>>, %arg4: memref<1x8x256xf32, #tpu.memory_space<vmem>>) attributes {dimension_semantics = [#tpu.dimension_semantics<parallel>], iteration_bounds = array<i64: 2>, scalar_prefetch = 0 : i64, scratch_operands = 0 : i64, tpu.core_type = #tpu.core_type<tc>, window_params = [{transform_indices = @transform_0, window_bounds = array<i64: 1, 4, 16, 16>}, {pipeline_mode = #tpu.pipeline_mode<synchronous>, transform_indices = @transform_1, window_bounds = array<i64: 8, 36>}, {pipeline_mode = #tpu.pipeline_mode<synchronous>, transform_indices = @transform_2, window_bounds = array<i64: 8, 1>}, {transform_indices = @transform_3, window_bounds = array<i64: 1, 8, 256>}]} {
    %c0 = arith.constant 0 : index
    %c0_0 = arith.constant 0 : index
    %c0_1 = arith.constant 0 : index
    %c0_2 = arith.constant 0 : index
    %0 = vector.load %arg1[%c0, %c0_0, %c0_1, %c0_2] : memref<1x4x16x16xf32, #tpu.memory_space<vmem>>, vector<1x4x16x16xf32>
    %1 = vector.shape_cast %0 : vector<1x4x16x16xf32> to vector<4x16x16xf32>
    %2 = vector.extract_strided_slice %1 {offsets = [0, 1, 0], sizes = [4, 1, 16], strides = [1, 1, 1]} : vector<4x16x16xf32> to vector<4x1x16xf32>
    %3 = vector.extract_strided_slice %1 {offsets = [0, 14, 0], sizes = [4, 1, 16], strides = [1, 1, 1]} : vector<4x16x16xf32> to vector<4x1x16xf32>
    %4 = tpu.concatenate %2, %1, %3 in 1 : vector<4x1x16xf32>, vector<4x16x16xf32>, vector<4x1x16xf32> -> vector<4x18x16xf32>
    %5 = vector.extract_strided_slice %4 {offsets = [0, 0, 1], sizes = [4, 18, 1], strides = [1, 1, 1]} : vector<4x18x16xf32> to vector<4x18x1xf32>
    %6 = vector.extract_strided_slice %4 {offsets = [0, 0, 14], sizes = [4, 18, 1], strides = [1, 1, 1]} : vector<4x18x16xf32> to vector<4x18x1xf32>
    %7 = tpu.concatenate %5, %4, %6 in 2 : vector<4x18x1xf32>, vector<4x18x16xf32>, vector<4x18x1xf32> -> vector<4x18x18xf32>
    %8 = vector.extract_strided_slice %7 {offsets = [0, 0, 0], sizes = [4, 16, 16], strides = [1, 1, 1]} : vector<4x18x18xf32> to vector<4x16x16xf32>
    %9 = vector.extract_strided_slice %7 {offsets = [0, 0, 1], sizes = [4, 16, 16], strides = [1, 1, 1]} : vector<4x18x18xf32> to vector<4x16x16xf32>
    %10 = vector.extract_strided_slice %7 {offsets = [0, 0, 2], sizes = [4, 16, 16], strides = [1, 1, 1]} : vector<4x18x18xf32> to vector<4x16x16xf32>
    %11 = vector.extract_strided_slice %7 {offsets = [0, 1, 0], sizes = [4, 16, 16], strides = [1, 1, 1]} : vector<4x18x18xf32> to vector<4x16x16xf32>
    %12 = vector.extract_strided_slice %7 {offsets = [0, 1, 1], sizes = [4, 16, 16], strides = [1, 1, 1]} : vector<4x18x18xf32> to vector<4x16x16xf32>
    %13 = vector.extract_strided_slice %7 {offsets = [0, 1, 2], sizes = [4, 16, 16], strides = [1, 1, 1]} : vector<4x18x18xf32> to vector<4x16x16xf32>
    %14 = vector.extract_strided_slice %7 {offsets = [0, 2, 0], sizes = [4, 16, 16], strides = [1, 1, 1]} : vector<4x18x18xf32> to vector<4x16x16xf32>
    %15 = vector.extract_strided_slice %7 {offsets = [0, 2, 1], sizes = [4, 16, 16], strides = [1, 1, 1]} : vector<4x18x18xf32> to vector<4x16x16xf32>
    %16 = vector.extract_strided_slice %7 {offsets = [0, 2, 2], sizes = [4, 16, 16], strides = [1, 1, 1]} : vector<4x18x18xf32> to vector<4x16x16xf32>
    %17 = tpu.concatenate %8, %9, %10, %11, %12, %13, %14, %15, %16 in 0 : vector<4x16x16xf32>, vector<4x16x16xf32>, vector<4x16x16xf32>, vector<4x16x16xf32>, vector<4x16x16xf32>, vector<4x16x16xf32>, vector<4x16x16xf32>, vector<4x16x16xf32>, vector<4x16x16xf32> -> vector<36x16x16xf32>
    %18 = vector.shape_cast %17 : vector<36x16x16xf32> to vector<36x256xf32>
    %c0_3 = arith.constant 0 : index
    %c0_4 = arith.constant 0 : index
    %19 = vector.load %arg2[%c0_3, %c0_4] : memref<8x36xf32, #tpu.memory_space<vmem>>, vector<8x36xf32>
    %cst = arith.constant dense<0.000000e+00> : vector<8x256xf32>
    %20 = tpu.matmul %19, %18, %cst {dimension_numbers = #tpu.dot_dimension_numbers<[1], [0], [0], [1], [0, 0, 1, 1], [], []>} : vector<8x36xf32>, vector<36x256xf32>, vector<8x256xf32> -> vector<8x256xf32>
    %c0_5 = arith.constant 0 : index
    %c0_6 = arith.constant 0 : index
    %21 = vector.load %arg3[%c0_5, %c0_6] : memref<8x1xf32, #tpu.memory_space<vmem>>, vector<8x1xf32>
    %22 = vector.broadcast %21 : vector<8x1xf32> to vector<8x256xf32>
    %23 = arith.addf %20, %22 : vector<8x256xf32>
    %c0_7 = arith.constant 0 : index
    %c0_8 = arith.constant 0 : index
    %c0_9 = arith.constant 0 : index
    %24 = vector.load %arg4[%c0_7, %c0_8, %c0_9] : memref<1x8x256xf32, #tpu.memory_space<vmem>>, vector<1x8x256xf32>
    %25 = vector.shape_cast %24 : vector<1x8x256xf32> to vector<8x256xf32>
    %26 = vector.shape_cast %23 : vector<8x256xf32> to vector<1x8x256xf32>
    tpu.vector_store %arg4[%c0_7, %c0_8, %c0_9], %26 {strides = array<i32>} : memref<1x8x256xf32, #tpu.memory_space<vmem>>, vector<1x8x256xf32>,
    return
  }
  func.func @transform_0(%arg0: i32) -> (i32, i32, i32, i32) {
    %c0_i32 = arith.constant 0 : i32
    %c0_i32_0 = arith.constant 0 : i32
    %c0_i32_1 = arith.constant 0 : i32
    %c0_i32_2 = arith.constant 0 : i32
    return %arg0, %c0_i32, %c0_i32_0, %c0_i32_1 : i32, i32, i32, i32
  }
  func.func @transform_1(%arg0: i32) -> (i32, i32) {
    %c0_i32 = arith.constant 0 : i32
    %c0_i32_0 = arith.constant 0 : i32
    %c0_i32_1 = arith.constant 0 : i32
    return %c0_i32, %c0_i32_0 : i32, i32
  }
  func.func @transform_2(%arg0: i32) -> (i32, i32) {
    %c0_i32 = arith.constant 0 : i32
    %c0_i32_0 = arith.constant 0 : i32
    %c0_i32_1 = arith.constant 0 : i32
    return %c0_i32, %c0_i32_0 : i32, i32
  }
  func.func @transform_3(%arg0: i32) -> (i32, i32, i32) {
    %c0_i32 = arith.constant 0 : i32
    %c0_i32_0 = arith.constant 0 : i32
    %c0_i32_1 = arith.constant 0 : i32
    return %arg0, %c0_i32, %c0_i32_0 : i32, i32, i32
  }
}

</mosaic_0001>

<llo_original>
// kernel: tpu_custom_call.1
$region0: #{tpu_custom_call.1}
  #allocation0 [shape = 'u32[]', space=smem, size = 0x4, offset = 0x4, fixed_abs, tag = 'smem constant byte address 0x4 - core index']
  #allocation1 [shape = 'u32[144,128]{1,0:T(1,128)}', space=vmem, size = 0x12000, scoped, tag = 'internal scratch']
  %s0 = inlined_call_operand.hbm [shape: f32[2,4,16,16], index: 0, kind: input, shape index: {}]
  %s1 = inlined_call_operand.vmem [shape: f32[8,36], index: 1, kind: input, shape index: {}]
  %s2 = inlined_call_operand.vmem [shape: f32[8,1], index: 2, kind: input, shape index: {}]
  %s3 = inlined_call_operand.hbm [shape: f32[2,8,256], index: 3, kind: output, shape index: {}]
  %s4 = sld [smem:[#allocation0]]
  $region49: #{tpu_custom_call.1} parent=0
    _
  %s6 = ssub.s32 1, %s4
  %s7 = scalar_select 0, %s6, %s4
  $region1: #{tpu_custom_call.1} parent=0
    #allocation2 [shape = 'u8[65536]{0}', space=vmem, size = 0x10000, scoped, tag = 'input window, operand 0']
    #allocation3 [shape = 's32[2]{0}', space=sflag, size = 0x8, scoped, tag = 'scoped memory for tpu_custom_call.1']
    #allocation4 [shape = 's32[2]{0}', space=sflag, size = 0x8, scoped, tag = 'scoped memory for tpu_custom_call.1']
    #allocation5 [shape = 'u8[16384]{0}', space=vmem, size = 0x4000, scoped, tag = 'output window, operand 0']
    %8 = vsyncpa [#allocation3], 0
    %s9 = scalar_lea.sflag [#allocation3], 1
    %10 = vsyncpa %s9, 0
    %11 = vsyncpa [#allocation4], 0
    %s12 = scalar_lea.sflag [#allocation4], 1
    %13 = vsyncpa %s12, 0
    loop: start=0, step=1, limit=4
    $region2: #{tpu_custom_call.1} parent=1 // loop_pre_header
      _
    $region3: #{tpu_custom_call.1} parent=1 // loop_header
      %s15 = sphi 0, %s19
      %p16 = scmp.ge.s32.totalorder %s15, 4
      %s25 = sphi 0, %s27
      %s28 = sphi 0, %s25
      %s29 = sphi 0, %s28
      %s45 = sphi 0, %s29
      %s49 = sphi 0, %s49
      %s51 = sphi 0, %s49
      %s52 = sphi 0, %s51
      %s66 = sphi 0, %s52
      %s70 = sphi 0, %s70
      %s72 = sphi 0, %s70
      %s73 = sphi 0, %s72
      %s87 = sphi 0, %s73
      %s93 = sphi 0, %s95
      %s96 = sphi 0, %s93
      %s97 = sphi 0, %s96
      %s113 = sphi 0, %s97
    $region4: #{tpu_custom_call.1} parent=1 // loop_header_branch
      %18 = sbr.rel (%p16) target = $region8
    $region5: #{tpu_custom_call.1} parent=1 // loop_body
      %s20 = ssub.s32 %s15, 1
      %s21 = ssub.s32 %s15, 2
      %s22 = sadd.s32 %s15, 1
      %s23 = ssub.s32 %s15, %s22
      %p24 = scmp.eq.s32.totalorder %s23, 0
      %s26 = sadd.s32 %s25, 1
      %s27 = scalar_select %p24, %s25, %s26
      %p30 = pneg %p24
      %p31 = scmp.eq.s32.totalorder %s15, 1
      %p32 = por %p30, %p31
      %p33 = scmp.ne.s32.totalorder %s25, %s28
      %p34 = scmp.eq.s32.totalorder %s15, 0
      %p35 = por %p33, %p34
      %p36 = scmp.ne.s32.totalorder %s25, %s28
      %p37 = scmp.eq.s32.totalorder %s20, 1
      %p38 = por %p36, %p37
      %p39 = scmp.ne.s32.totalorder %s28, %s29
      %p40 = scmp.eq.s32.totalorder %s20, 0
      %p41 = por %p39, %p40
      %p42 = scmp.ne.s32.totalorder %s28, %s29
      %p43 = scmp.eq.s32.totalorder %s21, 1
      %p44 = por %p42, %p43
      %p46 = scmp.ne.s32.totalorder %s29, %s45
      %p47 = scmp.eq.s32.totalorder %s21, 0
      %p48 = por %p46, %p47
      %s50 = sadd.s32 %s49, 1
      %p53 = scmp.eq.s32.totalorder %s15, 1
      %p54 = scmp.ne.s32.totalorder %s49, %s51
      %p55 = scmp.eq.s32.totalorder %s15, 0
      %p56 = por %p54, %p55
      %p57 = scmp.ne.s32.totalorder %s49, %s51
      %p58 = scmp.eq.s32.totalorder %s20, 1
      %p59 = por %p57, %p58
      %p60 = scmp.ne.s32.totalorder %s51, %s52
      %p61 = scmp.eq.s32.totalorder %s20, 0
      %p62 = por %p60, %p61
      %p63 = scmp.ne.s32.totalorder %s51, %s52
      %p64 = scmp.eq.s32.totalorder %s21, 1
      %p65 = por %p63, %p64
      %p67 = scmp.ne.s32.totalorder %s52, %s66
      %p68 = scmp.eq.s32.totalorder %s21, 0
      %p69 = por %p67, %p68
      %s71 = sadd.s32 %s70, 1
      %p74 = scmp.eq.s32.totalorder %s15, 1
      %p75 = scmp.ne.s32.totalorder %s70, %s72
      %p76 = scmp.eq.s32.totalorder %s15, 0
      %p77 = por %p75, %p76
      %p78 = scmp.ne.s32.totalorder %s70, %s72
      %p79 = scmp.eq.s32.totalorder %s20, 1
      %p80 = por %p78, %p79
      %p81 = scmp.ne.s32.totalorder %s72, %s73
      %p82 = scmp.eq.s32.totalorder %s20, 0
      %p83 = por %p81, %p82
      %p84 = scmp.ne.s32.totalorder %s72, %s73
      %p85 = scmp.eq.s32.totalorder %s21, 1
      %p86 = por %p84, %p85
      %p88 = scmp.ne.s32.totalorder %s73, %s87
      %p89 = scmp.eq.s32.totalorder %s21, 0
      %p90 = por %p88, %p89
      %s91 = ssub.s32 %s15, %s22
      %p92 = scmp.eq.s32.totalorder %s91, 0
      %s94 = sadd.s32 %s93, 1
      %s95 = scalar_select %p92, %s93, %s94
      %p98 = pneg %p92
      %p99 = scmp.eq.s32.totalorder %s15, 1
      %p100 = por %p98, %p99
      %p101 = scmp.ne.s32.totalorder %s93, %s96
      %p102 = scmp.eq.s32.totalorder %s15, 0
      %p103 = por %p101, %p102
      %p104 = scmp.ne.s32.totalorder %s93, %s96
      %p105 = scmp.eq.s32.totalorder %s20, 1
      %p106 = por %p104, %p105
      %p107 = scmp.ne.s32.totalorder %s96, %s97
      %p108 = scmp.eq.s32.totalorder %s20, 0
      %p109 = por %p107, %p108
      %p110 = scmp.ne.s32.totalorder %s96, %s97
      %p111 = scmp.eq.s32.totalorder %s21, 1
      %p112 = por %p110, %p111
      %p114 = scmp.ne.s32.totalorder %s97, %s113
      %p115 = scmp.eq.s32.totalorder %s21, 0
      %p116 = por %p114, %p115
      %p117 = scmp.le.s32.totalorder 1, %s15
      %p118 = scmp.lt.s32.totalorder %s15, 3
      %p119 = pnand %p117, %p118
      %p120 = pneg %p119
      // Predicated region
      $region9: #{tpu_custom_call.1} parent=5 // pred_check
        _
      $region10: #{tpu_custom_call.1} parent=5 // pred_check_branch
        %122 = sbr.rel (%p119) target = $region12
      $region11: #{tpu_custom_call.1} parent=5 // pred_region
        %s123 = ssub.s32 %s15, 1
        // Predicated region
        $region13: #{tpu_custom_call.1} parent=11 // pred_check
          %p124 = pneg %p62
        $region14: #{tpu_custom_call.1} parent=11 // pred_check_branch
          %126 = sbr.rel (%p124) target = $region16
        $region15: #{tpu_custom_call.1} parent=11 // pred_region
          _
        $region16: #{tpu_custom_call.1} parent=11 // pred_fallthru
          _
        // Predicated region
        $region17: #{tpu_custom_call.1} parent=11 // pred_check
          %p127 = pneg %p83
        $region18: #{tpu_custom_call.1} parent=11 // pred_check_branch
          %129 = sbr.rel (%p127) target = $region20
        $region19: #{tpu_custom_call.1} parent=11 // pred_region
          _
        $region20: #{tpu_custom_call.1} parent=11 // pred_fallthru
          _
      $region12: #{tpu_custom_call.1} parent=5 // pred_fallthru
        _
      %p130 = scmp.lt.s32.totalorder %s15, 2
      // Predicated region
      $region21: #{tpu_custom_call.1} parent=5 // pred_check
        %p131 = pneg %p130
      $region22: #{tpu_custom_call.1} parent=5 // pred_check_branch
        %133 = sbr.rel (%p131) target = $region24
      $region23: #{tpu_custom_call.1} parent=5 // pred_region
        // Predicated region
        $region25: #{tpu_custom_call.1} parent=23 // pred_check
          %p134 = pneg %p35
        $region26: #{tpu_custom_call.1} parent=23 // pred_check_branch
          %136 = sbr.rel (%p134) target = $region28
        $region27: #{tpu_custom_call.1} parent=23 // pred_region
          %s137 = sand.u32 %s25, 1
          %s138 = scalar_lea.sflag [#allocation3], %s137
          %s139 = sand.u32 %s25, 1
          %s140 = smul.addr %s139, 64
          %s141 = scalar_lea.vmem [#allocation2], %s140
          %s143 = ssub.s32 1024, 1024
          %144 = vsyncadd %s138, %s143
          %s145 = smul.addr %s15, 8
          %s146 = smul.addr %s145, 128
          %s147 = scalar_lea.hbm %s0, %s146
          %s148 = sshll.u32 %s141, 4
          %s149 = int_to_ptr.vmem [resolvable:$true] %s148
          %154 = dma.hbm_to_vmem [thread:$0]  %s147, 1024, %s149, %s138, 128, 128, 8
        $region28: #{tpu_custom_call.1} parent=23 // pred_fallthru
          _
      $region24: #{tpu_custom_call.1} parent=5 // pred_fallthru
        _
      %p155 = scmp.le.s32.totalorder 1, %s15
      %p156 = scmp.lt.s32.totalorder %s15, 3
      %p157 = pnand %p155, %p156
      %p158 = pneg %p157
      // Predicated region
      $region29: #{tpu_custom_call.1} parent=5 // pred_check
        _
      $region30: #{tpu_custom_call.1} parent=5 // pred_check_branch
        %160 = sbr.rel (%p157) target = $region32
      $region31: #{tpu_custom_call.1} parent=5 // pred_region
        %s161 = ssub.s32 %s15, 1
        %s162 = sand.u32 %s28, 1
        %s163 = scalar_lea.sflag [#allocation3], %s162
        %s164 = sand.u32 %s28, 1
        %s165 = smul.addr %s164, 64
        %s166 = scalar_lea.vmem [#allocation2], %s165
        // Predicated region
        $region33: #{tpu_custom_call.1} parent=31 // pred_check
          %p167 = pneg %p41
        $region34: #{tpu_custom_call.1} parent=31 // pred_check_branch
          %169 = sbr.rel (%p167) target = $region36
        $region35: #{tpu_custom_call.1} parent=31 // pred_region
          %170 = dma.done %s163, 1024
        $region36: #{tpu_custom_call.1} parent=31 // pred_fallthru
          _
        %s171 = sand.u32 %s28, 1
        %s172 = scalar_lea.sflag [#allocation3], %s171
        %s173 = sand.u32 %s28, 1
        %s174 = smul.addr %s173, 64
        %s175 = scalar_lea.vmem [#allocation2], %s174
        %p176 = pneg %p41
        %p177 = pneg %p38
        %p178 = pneg %p62
        %p179 = pneg %p59
        %p180 = pneg %p83
        %p181 = pneg %p80
        %p182 = pneg %p109
        %p183 = pneg %p106
        %s184 = sand.u32 %s96, 1
        %s185 = scalar_lea.sflag [#allocation4], %s184
        %s186 = sand.u32 %s96, 1
        %s187 = smul.addr %s186, 16
        %s188 = scalar_lea.vmem [#allocation5], %s187
        %v189 = vld [vmem:[%s166] sm:$0xff]
        %v190 = vld [vmem:[%s166 + $0x8] sm:$0xff]
        %v191 = vld [vmem:[%s166 + $0x10] sm:$0xff]
        %v192 = vld [vmem:[%s166 + $0x18] sm:$0xff]
        %v193 = vld [vmem:[%s166 + $0x20] sm:$0xff]
        %v194 = vld [vmem:[%s166 + $0x28] sm:$0xff]
        %v195 = vld [vmem:[%s166 + $0x30] sm:$0xff]
        %v196 = vld [vmem:[%s166 + $0x38] sm:$0xff]
        %v201 = vrot.slane %v189, 1
        %v202 = vrot.slane %v191, 1
        %v203 = vrot.slane %v193, 1
        %v204 = vrot.slane %v195, 1
        %vm213 = vcmask 1040384
        %v214 = vrot.slane %v189, 7
        %v215 = vrot.slane %v190, 7
        %v216 = vsel %vm213, %v214, %v215
        %v217 = vrot.slane %v191, 7
        %v218 = vrot.slane %v192, 7
        %v219 = vsel %vm213, %v217, %v218
        %v220 = vrot.slane %v193, 7
        %v221 = vrot.slane %v194, 7
        %v222 = vsel %vm213, %v220, %v221
        %v223 = vrot.slane %v195, 7
        %v224 = vrot.slane %v196, 7
        %v225 = vsel %vm213, %v223, %v224
        %v234 = vrot.slane %v190, 5
        %v235 = vrot.slane %v192, 5
        %v236 = vrot.slane %v194, 5
        %v237 = vrot.slane %v196, 5
        %v242 = vsel %vm213, %v201, %v214
        %v243 = vsel %vm213, %v202, %v217
        %v244 = vsel %vm213, %v203, %v220
        %v245 = vsel %vm213, %v204, %v223
        %v246 = vsel %vm213, %v215, %v234
        %v247 = vsel %vm213, %v218, %v235
        %v248 = vsel %vm213, %v221, %v236
        %v249 = vsel %vm213, %v224, %v237
        %258 = vrot.lane.b32.xlu0 %v242, 127
        %v259 = vpop.permute.xlu0 %258
        %260 = vrot.lane.b32.xlu0 %v216, 127
        %v261 = vpop.permute.xlu0 %260
        %262 = vrot.lane.b32.xlu0 %v246, 127
        %v263 = vpop.permute.xlu0 %262
        %264 = vrot.lane.b32.xlu0 %v243, 127
        %v265 = vpop.permute.xlu0 %264
        %266 = vrot.lane.b32.xlu0 %v219, 127
        %v267 = vpop.permute.xlu0 %266
        %268 = vrot.lane.b32.xlu0 %v247, 127
        %v269 = vpop.permute.xlu0 %268
        %270 = vrot.lane.b32.xlu0 %v244, 127
        %v271 = vpop.permute.xlu0 %270
        %272 = vrot.lane.b32.xlu0 %v222, 127
        %v273 = vpop.permute.xlu0 %272
        %274 = vrot.lane.b32.xlu0 %v248, 127
        %v275 = vpop.permute.xlu0 %274
        %276 = vrot.lane.b32.xlu0 %v245, 127
        %v277 = vpop.permute.xlu0 %276
        %278 = vrot.lane.b32.xlu0 %v225, 127
        %v279 = vpop.permute.xlu0 %278
        %280 = vrot.lane.b32.xlu0 %v249, 127
        %v281 = vpop.permute.xlu0 %280
        %294 = vrot.lane.b32.xlu0 %v242, 1
        %v295 = vpop.permute.xlu0 %294
        %296 = vrot.lane.b32.xlu0 %v216, 1
        %v297 = vpop.permute.xlu0 %296
        %298 = vrot.lane.b32.xlu0 %v246, 1
        %v299 = vpop.permute.xlu0 %298
        %300 = vrot.lane.b32.xlu0 %v243, 1
        %v301 = vpop.permute.xlu0 %300
        %302 = vrot.lane.b32.xlu0 %v219, 1
        %v303 = vpop.permute.xlu0 %302
        %304 = vrot.lane.b32.xlu0 %v247, 1
        %v305 = vpop.permute.xlu0 %304
        %306 = vrot.lane.b32.xlu0 %v244, 1
        %v307 = vpop.permute.xlu0 %306
        %308 = vrot.lane.b32.xlu0 %v222, 1
        %v309 = vpop.permute.xlu0 %308
        %310 = vrot.lane.b32.xlu0 %v248, 1
        %v311 = vpop.permute.xlu0 %310
        %312 = vrot.lane.b32.xlu0 %v245, 1
        %v313 = vpop.permute.xlu0 %312
        %314 = vrot.lane.b32.xlu0 %v225, 1
        %v315 = vpop.permute.xlu0 %314
        %316 = vrot.lane.b32.xlu0 %v249, 1
        %v317 = vpop.permute.xlu0 %316
        %330 = vrot.lane.b32.xlu0 %v242, 3
        %v331 = vpop.permute.xlu0 %330
        %332 = vrot.lane.b32.xlu0 %v216, 3
        %v333 = vpop.permute.xlu0 %332
        %334 = vrot.lane.b32.xlu0 %v246, 3
        %v335 = vpop.permute.xlu0 %334
        %336 = vrot.lane.b32.xlu0 %v243, 3
        %v337 = vpop.permute.xlu0 %336
        %338 = vrot.lane.b32.xlu0 %v219, 3
        %v339 = vpop.permute.xlu0 %338
        %340 = vrot.lane.b32.xlu0 %v247, 3
        %v341 = vpop.permute.xlu0 %340
        %342 = vrot.lane.b32.xlu0 %v244, 3
        %v343 = vpop.permute.xlu0 %342
        %344 = vrot.lane.b32.xlu0 %v222, 3
        %v345 = vpop.permute.xlu0 %344
        %346 = vrot.lane.b32.xlu0 %v248, 3
        %v347 = vpop.permute.xlu0 %346
        %348 = vrot.lane.b32.xlu0 %v245, 3
        %v349 = vpop.permute.xlu0 %348
        %350 = vrot.lane.b32.xlu0 %v225, 3
        %v351 = vpop.permute.xlu0 %350
        %352 = vrot.lane.b32.xlu0 %v249, 3
        %v353 = vpop.permute.xlu0 %352
        %vm366 = vcmask 7168
        %v367 = vsel %vm366, %v259, %v295
        %v368 = vsel %vm366, %v261, %v297
        %v369 = vsel %vm366, %v263, %v299
        %v370 = vsel %vm366, %v265, %v301
        %v371 = vsel %vm366, %v267, %v303
        %v372 = vsel %vm366, %v269, %v305
        %v373 = vsel %vm366, %v271, %v307
        %v374 = vsel %vm366, %v273, %v309
        %v375 = vsel %vm366, %v275, %v311
        %v376 = vsel %vm366, %v277, %v313
        %v377 = vsel %vm366, %v279, %v315
        %v378 = vsel %vm366, %v281, %v317
        %vm379 = vcmask 138240
        %v380 = vsel %vm379, %v367, %v331
        %v381 = vsel %vm379, %v368, %v333
        %v382 = vsel %vm379, %v369, %v335
        %v383 = vsel %vm379, %v370, %v337
        %v384 = vsel %vm379, %v371, %v339
        %v385 = vsel %vm379, %v372, %v341
        %v386 = vsel %vm379, %v373, %v343
        %v387 = vsel %vm379, %v374, %v345
        %v388 = vsel %vm379, %v375, %v347
        %v389 = vsel %vm379, %v376, %v349
        %v390 = vsel %vm379, %v377, %v351
        %v391 = vsel %vm379, %v378, %v353
        %400 = vrot.lane.b32.xlu0 %v380, 127
        %v401 = vpop.permute.xlu0 %400
        %402 = vrot.lane.b32.xlu0 %v381, 127
        %v403 = vpop.permute.xlu0 %402
        %404 = vrot.lane.b32.xlu0 %v383, 127
        %v405 = vpop.permute.xlu0 %404
        %406 = vrot.lane.b32.xlu0 %v384, 127
        %v407 = vpop.permute.xlu0 %406
        %408 = vrot.lane.b32.xlu0 %v386, 127
        %v409 = vpop.permute.xlu0 %408
        %410 = vrot.lane.b32.xlu0 %v387, 127
        %v411 = vpop.permute.xlu0 %410
        %412 = vrot.lane.b32.xlu0 %v389, 127
        %v413 = vpop.permute.xlu0 %412
        %414 = vrot.lane.b32.xlu0 %v390, 127
        %v415 = vpop.permute.xlu0 %414
        %424 = vrot.lane.b32.xlu0 %v380, 126
        %v425 = vpop.permute.xlu0 %424
        %426 = vrot.lane.b32.xlu0 %v381, 126
        %v427 = vpop.permute.xlu0 %426
        %428 = vrot.lane.b32.xlu0 %v383, 126
        %v429 = vpop.permute.xlu0 %428
        %430 = vrot.lane.b32.xlu0 %v384, 126
        %v431 = vpop.permute.xlu0 %430
        %432 = vrot.lane.b32.xlu0 %v386, 126
        %v433 = vpop.permute.xlu0 %432
        %434 = vrot.lane.b32.xlu0 %v387, 126
        %v435 = vpop.permute.xlu0 %434
        %436 = vrot.lane.b32.xlu0 %v389, 126
        %v437 = vpop.permute.xlu0 %436
        %438 = vrot.lane.b32.xlu0 %v390, 126
        %v439 = vpop.permute.xlu0 %438
        %vm452 = vcmask 1046528
        %v453 = vrot.slane %v380, 1
        %v454 = vrot.slane %v381, 1
        %v455 = vsel %vm452, %v453, %v454
        %v456 = vrot.slane %v382, 1
        %v457 = vsel %vm452, %v454, %v456
        %v458 = vrot.slane %v383, 1
        %v459 = vrot.slane %v384, 1
        %v460 = vsel %vm452, %v458, %v459
        %v461 = vrot.slane %v385, 1
        %v462 = vsel %vm452, %v459, %v461
        %v463 = vrot.slane %v386, 1
        %v464 = vrot.slane %v387, 1
        %v465 = vsel %vm452, %v463, %v464
        %v466 = vrot.slane %v388, 1
        %v467 = vsel %vm452, %v464, %v466
        %v468 = vrot.slane %v389, 1
        %v469 = vrot.slane %v390, 1
        %v470 = vsel %vm452, %v468, %v469
        %v471 = vrot.slane %v391, 1
        %v472 = vsel %vm452, %v469, %v471
        %481 = vrot.lane.b32.xlu0 %v455, 127
        %v482 = vpop.permute.xlu0 %481
        %483 = vrot.lane.b32.xlu0 %v457, 127
        %v484 = vpop.permute.xlu0 %483
        %485 = vrot.lane.b32.xlu0 %v460, 127
        %v486 = vpop.permute.xlu0 %485
        %487 = vrot.lane.b32.xlu0 %v462, 127
        %v488 = vpop.permute.xlu0 %487
        %489 = vrot.lane.b32.xlu0 %v465, 127
        %v490 = vpop.permute.xlu0 %489
        %491 = vrot.lane.b32.xlu0 %v467, 127
        %v492 = vpop.permute.xlu0 %491
        %493 = vrot.lane.b32.xlu0 %v470, 127
        %v494 = vpop.permute.xlu0 %493
        %495 = vrot.lane.b32.xlu0 %v472, 127
        %v496 = vpop.permute.xlu0 %495
        %505 = vrot.lane.b32.xlu0 %v455, 126
        %v506 = vpop.permute.xlu0 %505
        %507 = vrot.lane.b32.xlu0 %v457, 126
        %v508 = vpop.permute.xlu0 %507
        %509 = vrot.lane.b32.xlu0 %v460, 126
        %v510 = vpop.permute.xlu0 %509
        %511 = vrot.lane.b32.xlu0 %v462, 126
        %v512 = vpop.permute.xlu0 %511
        %513 = vrot.lane.b32.xlu0 %v465, 126
        %v514 = vpop.permute.xlu0 %513
        %515 = vrot.lane.b32.xlu0 %v467, 126
        %v516 = vpop.permute.xlu0 %515
        %517 = vrot.lane.b32.xlu0 %v470, 126
        %v518 = vpop.permute.xlu0 %517
        %519 = vrot.lane.b32.xlu0 %v472, 126
        %v520 = vpop.permute.xlu0 %519
        %vm529 = vcmask 1045504
        %v530 = vrot.slane %v380, 2
        %v531 = vrot.slane %v381, 2
        %v532 = vsel %vm529, %v530, %v531
        %v533 = vrot.slane %v382, 2
        %v534 = vsel %vm529, %v531, %v533
        %v535 = vrot.slane %v383, 2
        %v536 = vrot.slane %v384, 2
        %v537 = vsel %vm529, %v535, %v536
        %v538 = vrot.slane %v385, 2
        %v539 = vsel %vm529, %v536, %v538
        %v540 = vrot.slane %v386, 2
        %v541 = vrot.slane %v387, 2
        %v542 = vsel %vm529, %v540, %v541
        %v543 = vrot.slane %v388, 2
        %v544 = vsel %vm529, %v541, %v543
        %v545 = vrot.slane %v389, 2
        %v546 = vrot.slane %v390, 2
        %v547 = vsel %vm529, %v545, %v546
        %v548 = vrot.slane %v391, 2
        %v549 = vsel %vm529, %v546, %v548
        %558 = vrot.lane.b32.xlu0 %v532, 127
        %v559 = vpop.permute.xlu0 %558
        %560 = vrot.lane.b32.xlu0 %v534, 127
        %v561 = vpop.permute.xlu0 %560
        %562 = vrot.lane.b32.xlu0 %v537, 127
        %v563 = vpop.permute.xlu0 %562
        %564 = vrot.lane.b32.xlu0 %v539, 127
        %v565 = vpop.permute.xlu0 %564
        %566 = vrot.lane.b32.xlu0 %v542, 127
        %v567 = vpop.permute.xlu0 %566
        %568 = vrot.lane.b32.xlu0 %v544, 127
        %v569 = vpop.permute.xlu0 %568
        %570 = vrot.lane.b32.xlu0 %v547, 127
        %v571 = vpop.permute.xlu0 %570
        %572 = vrot.lane.b32.xlu0 %v549, 127
        %v573 = vpop.permute.xlu0 %572
        %582 = vrot.lane.b32.xlu0 %v532, 126
        %v583 = vpop.permute.xlu0 %582
        %584 = vrot.lane.b32.xlu0 %v534, 126
        %v585 = vpop.permute.xlu0 %584
        %586 = vrot.lane.b32.xlu0 %v537, 126
        %v587 = vpop.permute.xlu0 %586
        %588 = vrot.lane.b32.xlu0 %v539, 126
        %v589 = vpop.permute.xlu0 %588
        %590 = vrot.lane.b32.xlu0 %v542, 126
        %v591 = vpop.permute.xlu0 %590
        %592 = vrot.lane.b32.xlu0 %v544, 126
        %v593 = vpop.permute.xlu0 %592
        %594 = vrot.lane.b32.xlu0 %v547, 126
        %v595 = vpop.permute.xlu0 %594
        %596 = vrot.lane.b32.xlu0 %v549, 126
        %v597 = vpop.permute.xlu0 %596
        %v606 = vcombine.low %v380, %v386
        %v607 = vcombine.high %v380, %v386
        %v609 = vunpack.c.l.s4 1983009808
        %v610 = vunpack.c.0.s8 %v609
        %v611 = vlaneseq
        %v612 = vshrl.u32 %v611, 7
        %v613 = vsub.s32 %v610, %v612
        %v614 = vrot.slane %v606, %v613
        %v616 = vunpack.c.l.s4 1983009808
        %v617 = vunpack.c.0.s8 %v616
        %v618 = vlaneseq
        %v619 = vshrl.u32 %v618, 7
        %v620 = vsub.s32 %v617, %v619
        %v621 = vrot.slane %v607, %v620
        %v622 = vcombine.low %v383, %v389
        %v623 = vcombine.high %v383, %v389
        %v625 = vunpack.c.l.s4 1983009808
        %v626 = vunpack.c.0.s8 %v625
        %v627 = vlaneseq
        %v628 = vshrl.u32 %v627, 7
        %v629 = vsub.s32 %v626, %v628
        %v630 = vrot.slane %v622, %v629
        %v632 = vunpack.c.l.s4 1983009808
        %v633 = vunpack.c.0.s8 %v632
        %v634 = vlaneseq
        %v635 = vshrl.u32 %v634, 7
        %v636 = vsub.s32 %v633, %v635
        %v637 = vrot.slane %v623, %v636
        %v638 = vcombine.low %v401, %v409
        %v639 = vcombine.high %v401, %v409
        %v641 = vunpack.c.l.s4 1983009808
        %v642 = vunpack.c.0.s8 %v641
        %v643 = vlaneseq
        %v644 = vshrl.u32 %v643, 7
        %v645 = vsub.s32 %v642, %v644
        %v646 = vrot.slane %v638, %v645
        %v648 = vunpack.c.l.s4 1983009808
        %v649 = vunpack.c.0.s8 %v648
        %v650 = vlaneseq
        %v651 = vshrl.u32 %v650, 7
        %v652 = vsub.s32 %v649, %v651
        %v653 = vrot.slane %v639, %v652
        %v654 = vcombine.low %v405, %v413
        %v655 = vcombine.high %v405, %v413
        %v657 = vunpack.c.l.s4 1983009808
        %v658 = vunpack.c.0.s8 %v657
        %v659 = vlaneseq
        %v660 = vshrl.u32 %v659, 7
        %v661 = vsub.s32 %v658, %v660
        %v662 = vrot.slane %v654, %v661
        %v664 = vunpack.c.l.s4 1983009808
        %v665 = vunpack.c.0.s8 %v664
        %v666 = vlaneseq
        %v667 = vshrl.u32 %v666, 7
        %v668 = vsub.s32 %v665, %v667
        %v669 = vrot.slane %v655, %v668
        %v670 = vcombine.low %v614, %v630
        %v671 = vcombine.high %v614, %v630
        %v673 = vunpack.c.l.s4 1934713408
        %v674 = vunpack.c.0.s8 %v673
        %v675 = vlaneseq
        %v676 = vshrl.u32 %v675, 7
        %v677 = vsub.s32 %v674, %v676
        %v678 = vrot.slane %v670, %v677
        %v680 = vunpack.c.l.s4 1934713408
        %v681 = vunpack.c.0.s8 %v680
        %v682 = vlaneseq
        %v683 = vshrl.u32 %v682, 7
        %v684 = vsub.s32 %v681, %v683
        %v685 = vrot.slane %v671, %v684
        %v686 = vcombine.low %v621, %v637
        %v687 = vcombine.high %v621, %v637
        %v689 = vunpack.c.l.s4 1934713408
        %v690 = vunpack.c.0.s8 %v689
        %v691 = vlaneseq
        %v692 = vshrl.u32 %v691, 7
        %v693 = vsub.s32 %v690, %v692
        %v694 = vrot.slane %v686, %v693
        %v696 = vunpack.c.l.s4 1934713408
        %v697 = vunpack.c.0.s8 %v696
        %v698 = vlaneseq
        %v699 = vshrl.u32 %v698, 7
        %v700 = vsub.s32 %v697, %v699
        %v701 = vrot.slane %v687, %v700
        %v702 = vcombine.low %v646, %v662
        %v703 = vcombine.high %v646, %v662
        %v705 = vunpack.c.l.s4 1934713408
        %v706 = vunpack.c.0.s8 %v705
        %v707 = vlaneseq
        %v708 = vshrl.u32 %v707, 7
        %v709 = vsub.s32 %v706, %v708
        %v710 = vrot.slane %v702, %v709
        %v712 = vunpack.c.l.s4 1934713408
        %v713 = vunpack.c.0.s8 %v712
        %v714 = vlaneseq
        %v715 = vshrl.u32 %v714, 7
        %v716 = vsub.s32 %v713, %v715
        %v717 = vrot.slane %v703, %v716
        %v718 = vcombine.low %v653, %v669
        %v719 = vcombine.high %v653, %v669
        %v721 = vunpack.c.l.s4 1934713408
        %v722 = vunpack.c.0.s8 %v721
        %v723 = vlaneseq
        %v724 = vshrl.u32 %v723, 7
        %v725 = vsub.s32 %v722, %v724
        %v726 = vrot.slane %v718, %v725
        %v728 = vunpack.c.l.s4 1934713408
        %v729 = vunpack.c.0.s8 %v728
        %v730 = vlaneseq
        %v731 = vshrl.u32 %v730, 7
        %v732 = vsub.s32 %v729, %v731
        %v733 = vrot.slane %v719, %v732
        %v734 = vcombine.low %v678, %v710
        %v735 = vcombine.high %v678, %v710
        %v736 = vcombine.low %v685, %v717
        %v737 = vcombine.high %v685, %v717
        %v738 = vcombine.low %v694, %v726
        %v739 = vcombine.high %v694, %v726
        %v740 = vcombine.low %v701, %v733
        %v741 = vcombine.high %v701, %v733
        %v742 = vcombine.low %v425, %v433
        %v743 = vcombine.high %v425, %v433
        %v745 = vunpack.c.l.s4 1983009808
        %v746 = vunpack.c.0.s8 %v745
        %v747 = vlaneseq
        %v748 = vshrl.u32 %v747, 7
        %v749 = vsub.s32 %v746, %v748
        %v750 = vrot.slane %v742, %v749
        %v752 = vunpack.c.l.s4 1983009808
        %v753 = vunpack.c.0.s8 %v752
        %v754 = vlaneseq
        %v755 = vshrl.u32 %v754, 7
        %v756 = vsub.s32 %v753, %v755
        %v757 = vrot.slane %v743, %v756
        %v758 = vcombine.low %v429, %v437
        %v759 = vcombine.high %v429, %v437
        %v761 = vunpack.c.l.s4 1983009808
        %v762 = vunpack.c.0.s8 %v761
        %v763 = vlaneseq
        %v764 = vshrl.u32 %v763, 7
        %v765 = vsub.s32 %v762, %v764
        %v766 = vrot.slane %v758, %v765
        %v768 = vunpack.c.l.s4 1983009808
        %v769 = vunpack.c.0.s8 %v768
        %v770 = vlaneseq
        %v771 = vshrl.u32 %v770, 7
        %v772 = vsub.s32 %v769, %v771
        %v773 = vrot.slane %v759, %v772
        %v774 = vcombine.low %v455, %v465
        %v775 = vcombine.high %v455, %v465
        %v777 = vunpack.c.l.s4 1983009808
        %v778 = vunpack.c.0.s8 %v777
        %v779 = vlaneseq
        %v780 = vshrl.u32 %v779, 7
        %v781 = vsub.s32 %v778, %v780
        %v782 = vrot.slane %v774, %v781
        %v784 = vunpack.c.l.s4 1983009808
        %v785 = vunpack.c.0.s8 %v784
        %v786 = vlaneseq
        %v787 = vshrl.u32 %v786, 7
        %v788 = vsub.s32 %v785, %v787
        %v789 = vrot.slane %v775, %v788
        %v790 = vcombine.low %v460, %v470
        %v791 = vcombine.high %v460, %v470
        %v793 = vunpack.c.l.s4 1983009808
        %v794 = vunpack.c.0.s8 %v793
        %v795 = vlaneseq
        %v796 = vshrl.u32 %v795, 7
        %v797 = vsub.s32 %v794, %v796
        %v798 = vrot.slane %v790, %v797
        %v800 = vunpack.c.l.s4 1983009808
        %v801 = vunpack.c.0.s8 %v800
        %v802 = vlaneseq
        %v803 = vshrl.u32 %v802, 7
        %v804 = vsub.s32 %v801, %v803
        %v805 = vrot.slane %v791, %v804
        %v806 = vcombine.low %v750, %v766
        %v807 = vcombine.high %v750, %v766
        %v809 = vunpack.c.l.s4 1934713408
        %v810 = vunpack.c.0.s8 %v809
        %v811 = vlaneseq
        %v812 = vshrl.u32 %v811, 7
        %v813 = vsub.s32 %v810, %v812
        %v814 = vrot.slane %v806, %v813
        %v816 = vunpack.c.l.s4 1934713408
        %v817 = vunpack.c.0.s8 %v816
        %v818 = vlaneseq
        %v819 = vshrl.u32 %v818, 7
        %v820 = vsub.s32 %v817, %v819
        %v821 = vrot.slane %v807, %v820
        %v822 = vcombine.low %v757, %v773
        %v823 = vcombine.high %v757, %v773
        %v825 = vunpack.c.l.s4 1934713408
        %v826 = vunpack.c.0.s8 %v825
        %v827 = vlaneseq
        %v828 = vshrl.u32 %v827, 7
        %v829 = vsub.s32 %v826, %v828
        %v830 = vrot.slane %v822, %v829
        %v832 = vunpack.c.l.s4 1934713408
        %v833 = vunpack.c.0.s8 %v832
        %v834 = vlaneseq
        %v835 = vshrl.u32 %v834, 7
        %v836 = vsub.s32 %v833, %v835
        %v837 = vrot.slane %v823, %v836
        %v838 = vcombine.low %v782, %v798
        %v839 = vcombine.high %v782, %v798
        %v841 = vunpack.c.l.s4 1934713408
        %v842 = vunpack.c.0.s8 %v841
        %v843 = vlaneseq
        %v844 = vshrl.u32 %v843, 7
        %v845 = vsub.s32 %v842, %v844
        %v846 = vrot.slane %v838, %v845
        %v848 = vunpack.c.l.s4 1934713408
        %v849 = vunpack.c.0.s8 %v848
        %v850 = vlaneseq
        %v851 = vshrl.u32 %v850, 7
        %v852 = vsub.s32 %v849, %v851
        %v853 = vrot.slane %v839, %v852
        %v854 = vcombine.low %v789, %v805
        %v855 = vcombine.high %v789, %v805
        %v857 = vunpack.c.l.s4 1934713408
        %v858 = vunpack.c.0.s8 %v857
        %v859 = vlaneseq
        %v860 = vshrl.u32 %v859, 7
        %v861 = vsub.s32 %v858, %v860
        %v862 = vrot.slane %v854, %v861
        %v864 = vunpack.c.l.s4 1934713408
        %v865 = vunpack.c.0.s8 %v864
        %v866 = vlaneseq
        %v867 = vshrl.u32 %v866, 7
        %v868 = vsub.s32 %v865, %v867
        %v869 = vrot.slane %v855, %v868
        %v870 = vcombine.low %v814, %v846
        %v871 = vcombine.high %v814, %v846
        %v872 = vcombine.low %v821, %v853
        %v873 = vcombine.high %v821, %v853
        %v874 = vcombine.low %v830, %v862
        %v875 = vcombine.high %v830, %v862
        %v876 = vcombine.low %v837, %v869
        %v877 = vcombine.high %v837, %v869
        %v878 = vcombine.low %v482, %v490
        %v879 = vcombine.high %v482, %v490
        %v881 = vunpack.c.l.s4 1983009808
        %v882 = vunpack.c.0.s8 %v881
        %v883 = vlaneseq
        %v884 = vshrl.u32 %v883, 7
        %v885 = vsub.s32 %v882, %v884
        %v886 = vrot.slane %v878, %v885
        %v888 = vunpack.c.l.s4 1983009808
        %v889 = vunpack.c.0.s8 %v888
        %v890 = vlaneseq
        %v891 = vshrl.u32 %v890, 7
        %v892 = vsub.s32 %v889, %v891
        %v893 = vrot.slane %v879, %v892
        %v894 = vcombine.low %v486, %v494
        %v895 = vcombine.high %v486, %v494
        %v897 = vunpack.c.l.s4 1983009808
        %v898 = vunpack.c.0.s8 %v897
        %v899 = vlaneseq
        %v900 = vshrl.u32 %v899, 7
        %v901 = vsub.s32 %v898, %v900
        %v902 = vrot.slane %v894, %v901
        %v904 = vunpack.c.l.s4 1983009808
        %v905 = vunpack.c.0.s8 %v904
        %v906 = vlaneseq
        %v907 = vshrl.u32 %v906, 7
        %v908 = vsub.s32 %v905, %v907
        %v909 = vrot.slane %v895, %v908
        %v910 = vcombine.low %v506, %v514
        %v911 = vcombine.high %v506, %v514
        %v913 = vunpack.c.l.s4 1983009808
        %v914 = vunpack.c.0.s8 %v913
        %v915 = vlaneseq
        %v916 = vshrl.u32 %v915, 7
        %v917 = vsub.s32 %v914, %v916
        %v918 = vrot.slane %v910, %v917
        %v920 = vunpack.c.l.s4 1983009808
        %v921 = vunpack.c.0.s8 %v920
        %v922 = vlaneseq
        %v923 = vshrl.u32 %v922, 7
        %v924 = vsub.s32 %v921, %v923
        %v925 = vrot.slane %v911, %v924
        %v926 = vcombine.low %v510, %v518
        %v927 = vcombine.high %v510, %v518
        %v929 = vunpack.c.l.s4 1983009808
        %v930 = vunpack.c.0.s8 %v929
        %v931 = vlaneseq
        %v932 = vshrl.u32 %v931, 7
        %v933 = vsub.s32 %v930, %v932
        %v934 = vrot.slane %v926, %v933
        %v936 = vunpack.c.l.s4 1983009808
        %v937 = vunpack.c.0.s8 %v936
        %v938 = vlaneseq
        %v939 = vshrl.u32 %v938, 7
        %v940 = vsub.s32 %v937, %v939
        %v941 = vrot.slane %v927, %v940
        %v942 = vcombine.low %v886, %v902
        %v943 = vcombine.high %v886, %v902
        %v945 = vunpack.c.l.s4 1934713408
        %v946 = vunpack.c.0.s8 %v945
        %v947 = vlaneseq
        %v948 = vshrl.u32 %v947, 7
        %v949 = vsub.s32 %v946, %v948
        %v950 = vrot.slane %v942, %v949
        %v952 = vunpack.c.l.s4 1934713408
        %v953 = vunpack.c.0.s8 %v952
        %v954 = vlaneseq
        %v955 = vshrl.u32 %v954, 7
        %v956 = vsub.s32 %v953, %v955
        %v957 = vrot.slane %v943, %v956
        %v958 = vcombine.low %v893, %v909
        %v959 = vcombine.high %v893, %v909
        %v961 = vunpack.c.l.s4 1934713408
        %v962 = vunpack.c.0.s8 %v961
        %v963 = vlaneseq
        %v964 = vshrl.u32 %v963, 7
        %v965 = vsub.s32 %v962, %v964
        %v966 = vrot.slane %v958, %v965
        %v968 = vunpack.c.l.s4 1934713408
        %v969 = vunpack.c.0.s8 %v968
        %v970 = vlaneseq
        %v971 = vshrl.u32 %v970, 7
        %v972 = vsub.s32 %v969, %v971
        %v973 = vrot.slane %v959, %v972
        %v974 = vcombine.low %v918, %v934
        %v975 = vcombine.high %v918, %v934
        %v977 = vunpack.c.l.s4 1934713408
        %v978 = vunpack.c.0.s8 %v977
        %v979 = vlaneseq
        %v980 = vshrl.u32 %v979, 7
        %v981 = vsub.s32 %v978, %v980
        %v982 = vrot.slane %v974, %v981
        %v984 = vunpack.c.l.s4 1934713408
        %v985 = vunpack.c.0.s8 %v984
        %v986 = vlaneseq
        %v987 = vshrl.u32 %v986, 7
        %v988 = vsub.s32 %v985, %v987
        %v989 = vrot.slane %v975, %v988
        %v990 = vcombine.low %v925, %v941
        %v991 = vcombine.high %v925, %v941
        %v993 = vunpack.c.l.s4 1934713408
        %v994 = vunpack.c.0.s8 %v993
        %v995 = vlaneseq
        %v996 = vshrl.u32 %v995, 7
        %v997 = vsub.s32 %v994, %v996
        %v998 = vrot.slane %v990, %v997
        %v1000 = vunpack.c.l.s4 1934713408
        %v1001 = vunpack.c.0.s8 %v1000
        %v1002 = vlaneseq
        %v1003 = vshrl.u32 %v1002, 7
        %v1004 = vsub.s32 %v1001, %v1003
        %v1005 = vrot.slane %v991, %v1004
        %v1006 = vcombine.low %v950, %v982
        %v1007 = vcombine.high %v950, %v982
        %v1008 = vcombine.low %v957, %v989
        %v1009 = vcombine.high %v957, %v989
        %v1010 = vcombine.low %v966, %v998
        %v1011 = vcombine.high %v966, %v998
        %v1012 = vcombine.low %v973, %v1005
        %v1013 = vcombine.high %v973, %v1005
        %v1014 = vcombine.low %v532, %v542
        %v1015 = vcombine.high %v532, %v542
        %v1017 = vunpack.c.l.s4 1983009808
        %v1018 = vunpack.c.0.s8 %v1017
        %v1019 = vlaneseq
        %v1020 = vshrl.u32 %v1019, 7
        %v1021 = vsub.s32 %v1018, %v1020
        %v1022 = vrot.slane %v1014, %v1021
        %v1024 = vunpack.c.l.s4 1983009808
        %v1025 = vunpack.c.0.s8 %v1024
        %v1026 = vlaneseq
        %v1027 = vshrl.u32 %v1026, 7
        %v1028 = vsub.s32 %v1025, %v1027
        %v1029 = vrot.slane %v1015, %v1028
        %v1030 = vcombine.low %v537, %v547
        %v1031 = vcombine.high %v537, %v547
        %v1033 = vunpack.c.l.s4 1983009808
        %v1034 = vunpack.c.0.s8 %v1033
        %v1035 = vlaneseq
        %v1036 = vshrl.u32 %v1035, 7
        %v1037 = vsub.s32 %v1034, %v1036
        %v1038 = vrot.slane %v1030, %v1037
        %v1040 = vunpack.c.l.s4 1983009808
        %v1041 = vunpack.c.0.s8 %v1040
        %v1042 = vlaneseq
        %v1043 = vshrl.u32 %v1042, 7
        %v1044 = vsub.s32 %v1041, %v1043
        %v1045 = vrot.slane %v1031, %v1044
        %v1046 = vcombine.low %v559, %v567
        %v1047 = vcombine.high %v559, %v567
        %v1049 = vunpack.c.l.s4 1983009808
        %v1050 = vunpack.c.0.s8 %v1049
        %v1051 = vlaneseq
        %v1052 = vshrl.u32 %v1051, 7
        %v1053 = vsub.s32 %v1050, %v1052
        %v1054 = vrot.slane %v1046, %v1053
        %v1056 = vunpack.c.l.s4 1983009808
        %v1057 = vunpack.c.0.s8 %v1056
        %v1058 = vlaneseq
        %v1059 = vshrl.u32 %v1058, 7
        %v1060 = vsub.s32 %v1057, %v1059
        %v1061 = vrot.slane %v1047, %v1060
        %v1062 = vcombine.low %v563, %v571
        %v1063 = vcombine.high %v563, %v571
        %v1065 = vunpack.c.l.s4 1983009808
        %v1066 = vunpack.c.0.s8 %v1065
        %v1067 = vlaneseq
        %v1068 = vshrl.u32 %v1067, 7
        %v1069 = vsub.s32 %v1066, %v1068
        %v1070 = vrot.slane %v1062, %v1069
        %v1072 = vunpack.c.l.s4 1983009808
        %v1073 = vunpack.c.0.s8 %v1072
        %v1074 = vlaneseq
        %v1075 = vshrl.u32 %v1074, 7
        %v1076 = vsub.s32 %v1073, %v1075
        %v1077 = vrot.slane %v1063, %v1076
        %v1078 = vcombine.low %v1022, %v1038
        %v1079 = vcombine.high %v1022, %v1038
        %v1081 = vunpack.c.l.s4 1934713408
        %v1082 = vunpack.c.0.s8 %v1081
        %v1083 = vlaneseq
        %v1084 = vshrl.u32 %v1083, 7
        %v1085 = vsub.s32 %v1082, %v1084
        %v1086 = vrot.slane %v1078, %v1085
        %v1088 = vunpack.c.l.s4 1934713408
        %v1089 = vunpack.c.0.s8 %v1088
        %v1090 = vlaneseq
        %v1091 = vshrl.u32 %v1090, 7
        %v1092 = vsub.s32 %v1089, %v1091
        %v1093 = vrot.slane %v1079, %v1092
        %v1094 = vcombine.low %v1029, %v1045
        %v1095 = vcombine.high %v1029, %v1045
        %v1097 = vunpack.c.l.s4 1934713408
        %v1098 = vunpack.c.0.s8 %v1097
        %v1099 = vlaneseq
        %v1100 = vshrl.u32 %v1099, 7
        %v1101 = vsub.s32 %v1098, %v1100
        %v1102 = vrot.slane %v1094, %v1101
        %v1104 = vunpack.c.l.s4 1934713408
        %v1105 = vunpack.c.0.s8 %v1104
        %v1106 = vlaneseq
        %v1107 = vshrl.u32 %v1106, 7
        %v1108 = vsub.s32 %v1105, %v1107
        %v1109 = vrot.slane %v1095, %v1108
        %v1110 = vcombine.low %v1054, %v1070
        %v1111 = vcombine.high %v1054, %v1070
        %v1113 = vunpack.c.l.s4 1934713408
        %v1114 = vunpack.c.0.s8 %v1113
        %v1115 = vlaneseq
        %v1116 = vshrl.u32 %v1115, 7
        %v1117 = vsub.s32 %v1114, %v1116
        %v1118 = vrot.slane %v1110, %v1117
        %v1120 = vunpack.c.l.s4 1934713408
        %v1121 = vunpack.c.0.s8 %v1120
        %v1122 = vlaneseq
        %v1123 = vshrl.u32 %v1122, 7
        %v1124 = vsub.s32 %v1121, %v1123
        %v1125 = vrot.slane %v1111, %v1124
        %v1126 = vcombine.low %v1061, %v1077
        %v1127 = vcombine.high %v1061, %v1077
        %v1129 = vunpack.c.l.s4 1934713408
        %v1130 = vunpack.c.0.s8 %v1129
        %v1131 = vlaneseq
        %v1132 = vshrl.u32 %v1131, 7
        %v1133 = vsub.s32 %v1130, %v1132
        %v1134 = vrot.slane %v1126, %v1133
        %v1136 = vunpack.c.l.s4 1934713408
        %v1137 = vunpack.c.0.s8 %v1136
        %v1138 = vlaneseq
        %v1139 = vshrl.u32 %v1138, 7
        %v1140 = vsub.s32 %v1137, %v1139
        %v1141 = vrot.slane %v1127, %v1140
        %v1142 = vcombine.low %v1086, %v1118
        %v1143 = vcombine.high %v1086, %v1118
        %v1144 = vcombine.low %v1093, %v1125
        %v1145 = vcombine.high %v1093, %v1125
        %v1146 = vcombine.low %v1102, %v1134
        %v1147 = vcombine.high %v1102, %v1134
        %v1148 = vcombine.low %v1109, %v1141
        %v1149 = vcombine.high %v1109, %v1141
        %v1150 = vcombine.low %v583, %v591
        %v1151 = vcombine.high %v583, %v591
        %v1153 = vunpack.c.l.s4 1983009808
        %v1154 = vunpack.c.0.s8 %v1153
        %v1155 = vlaneseq
        %v1156 = vshrl.u32 %v1155, 7
        %v1157 = vsub.s32 %v1154, %v1156
        %v1158 = vrot.slane %v1150, %v1157
        %v1160 = vunpack.c.l.s4 1983009808
        %v1161 = vunpack.c.0.s8 %v1160
        %v1162 = vlaneseq
        %v1163 = vshrl.u32 %v1162, 7
        %v1164 = vsub.s32 %v1161, %v1163
        %v1165 = vrot.slane %v1151, %v1164
        %v1166 = vcombine.low %v587, %v595
        %v1167 = vcombine.high %v587, %v595
        %v1169 = vunpack.c.l.s4 1983009808
        %v1170 = vunpack.c.0.s8 %v1169
        %v1171 = vlaneseq
        %v1172 = vshrl.u32 %v1171, 7
        %v1173 = vsub.s32 %v1170, %v1172
        %v1174 = vrot.slane %v1166, %v1173
        %v1176 = vunpack.c.l.s4 1983009808
        %v1177 = vunpack.c.0.s8 %v1176
        %v1178 = vlaneseq
        %v1179 = vshrl.u32 %v1178, 7
        %v1180 = vsub.s32 %v1177, %v1179
        %v1181 = vrot.slane %v1167, %v1180
        %v1182 = vcombine.low %v1158, %v1174
        %v1183 = vcombine.high %v1158, %v1174
        %v1185 = vunpack.c.l.s4 1934713408
        %v1186 = vunpack.c.0.s8 %v1185
        %v1187 = vlaneseq
        %v1188 = vshrl.u32 %v1187, 7
        %v1189 = vsub.s32 %v1186, %v1188
        %v1190 = vrot.slane %v1182, %v1189
        %v1192 = vunpack.c.l.s4 1934713408
        %v1193 = vunpack.c.0.s8 %v1192
        %v1194 = vlaneseq
        %v1195 = vshrl.u32 %v1194, 7
        %v1196 = vsub.s32 %v1193, %v1195
        %v1197 = vrot.slane %v1183, %v1196
        %v1198 = vcombine.low %v1165, %v1181
        %v1199 = vcombine.high %v1165, %v1181
        %v1201 = vunpack.c.l.s4 1934713408
        %v1202 = vunpack.c.0.s8 %v1201
        %v1203 = vlaneseq
        %v1204 = vshrl.u32 %v1203, 7
        %v1205 = vsub.s32 %v1202, %v1204
        %v1206 = vrot.slane %v1198, %v1205
        %v1208 = vunpack.c.l.s4 1934713408
        %v1209 = vunpack.c.0.s8 %v1208
        %v1210 = vlaneseq
        %v1211 = vshrl.u32 %v1210, 7
        %v1212 = vsub.s32 %v1209, %v1211
        %v1213 = vrot.slane %v1199, %v1212
        %v1214 = vcombine.high %v1190, 0.0
        %v1215 = vcombine.high %v1197, 0.0
        %v1216 = vcombine.high %v1206, 0.0
        %v1217 = vcombine.high %v1213, 0.0
        %v1218 = vcombine.low %v381, %v387
        %v1219 = vcombine.high %v381, %v387
        %v1221 = vunpack.c.l.s4 1983009808
        %v1222 = vunpack.c.0.s8 %v1221
        %v1223 = vlaneseq
        %v1224 = vshrl.u32 %v1223, 7
        %v1225 = vsub.s32 %v1222, %v1224
        %v1226 = vrot.slane %v1218, %v1225
        %v1228 = vunpack.c.l.s4 1983009808
        %v1229 = vunpack.c.0.s8 %v1228
        %v1230 = vlaneseq
        %v1231 = vshrl.u32 %v1230, 7
        %v1232 = vsub.s32 %v1229, %v1231
        %v1233 = vrot.slane %v1219, %v1232
        %v1234 = vcombine.low %v384, %v390
        %v1235 = vcombine.high %v384, %v390
        %v1237 = vunpack.c.l.s4 1983009808
        %v1238 = vunpack.c.0.s8 %v1237
        %v1239 = vlaneseq
        %v1240 = vshrl.u32 %v1239, 7
        %v1241 = vsub.s32 %v1238, %v1240
        %v1242 = vrot.slane %v1234, %v1241
        %v1244 = vunpack.c.l.s4 1983009808
        %v1245 = vunpack.c.0.s8 %v1244
        %v1246 = vlaneseq
        %v1247 = vshrl.u32 %v1246, 7
        %v1248 = vsub.s32 %v1245, %v1247
        %v1249 = vrot.slane %v1235, %v1248
        %v1250 = vcombine.low %v403, %v411
        %v1251 = vcombine.high %v403, %v411
        %v1253 = vunpack.c.l.s4 1983009808
        %v1254 = vunpack.c.0.s8 %v1253
        %v1255 = vlaneseq
        %v1256 = vshrl.u32 %v1255, 7
        %v1257 = vsub.s32 %v1254, %v1256
        %v1258 = vrot.slane %v1250, %v1257
        %v1260 = vunpack.c.l.s4 1983009808
        %v1261 = vunpack.c.0.s8 %v1260
        %v1262 = vlaneseq
        %v1263 = vshrl.u32 %v1262, 7
        %v1264 = vsub.s32 %v1261, %v1263
        %v1265 = vrot.slane %v1251, %v1264
        %v1266 = vcombine.low %v407, %v415
        %v1267 = vcombine.high %v407, %v415
        %v1269 = vunpack.c.l.s4 1983009808
        %v1270 = vunpack.c.0.s8 %v1269
        %v1271 = vlaneseq
        %v1272 = vshrl.u32 %v1271, 7
        %v1273 = vsub.s32 %v1270, %v1272
        %v1274 = vrot.slane %v1266, %v1273
        %v1276 = vunpack.c.l.s4 1983009808
        %v1277 = vunpack.c.0.s8 %v1276
        %v1278 = vlaneseq
        %v1279 = vshrl.u32 %v1278, 7
        %v1280 = vsub.s32 %v1277, %v1279
        %v1281 = vrot.slane %v1267, %v1280
        %v1282 = vcombine.low %v1226, %v1242
        %v1283 = vcombine.high %v1226, %v1242
        %v1285 = vunpack.c.l.s4 1934713408
        %v1286 = vunpack.c.0.s8 %v1285
        %v1287 = vlaneseq
        %v1288 = vshrl.u32 %v1287, 7
        %v1289 = vsub.s32 %v1286, %v1288
        %v1290 = vrot.slane %v1282, %v1289
        %v1292 = vunpack.c.l.s4 1934713408
        %v1293 = vunpack.c.0.s8 %v1292
        %v1294 = vlaneseq
        %v1295 = vshrl.u32 %v1294, 7
        %v1296 = vsub.s32 %v1293, %v1295
        %v1297 = vrot.slane %v1283, %v1296
        %v1298 = vcombine.low %v1233, %v1249
        %v1299 = vcombine.high %v1233, %v1249
        %v1301 = vunpack.c.l.s4 1934713408
        %v1302 = vunpack.c.0.s8 %v1301
        %v1303 = vlaneseq
        %v1304 = vshrl.u32 %v1303, 7
        %v1305 = vsub.s32 %v1302, %v1304
        %v1306 = vrot.slane %v1298, %v1305
        %v1308 = vunpack.c.l.s4 1934713408
        %v1309 = vunpack.c.0.s8 %v1308
        %v1310 = vlaneseq
        %v1311 = vshrl.u32 %v1310, 7
        %v1312 = vsub.s32 %v1309, %v1311
        %v1313 = vrot.slane %v1299, %v1312
        %v1314 = vcombine.low %v1258, %v1274
        %v1315 = vcombine.high %v1258, %v1274
        %v1317 = vunpack.c.l.s4 1934713408
        %v1318 = vunpack.c.0.s8 %v1317
        %v1319 = vlaneseq
        %v1320 = vshrl.u32 %v1319, 7
        %v1321 = vsub.s32 %v1318, %v1320
        %v1322 = vrot.slane %v1314, %v1321
        %v1324 = vunpack.c.l.s4 1934713408
        %v1325 = vunpack.c.0.s8 %v1324
        %v1326 = vlaneseq
        %v1327 = vshrl.u32 %v1326, 7
        %v1328 = vsub.s32 %v1325, %v1327
        %v1329 = vrot.slane %v1315, %v1328
        %v1330 = vcombine.low %v1265, %v1281
        %v1331 = vcombine.high %v1265, %v1281
        %v1333 = vunpack.c.l.s4 1934713408
        %v1334 = vunpack.c.0.s8 %v1333
        %v1335 = vlaneseq
        %v1336 = vshrl.u32 %v1335, 7
        %v1337 = vsub.s32 %v1334, %v1336
        %v1338 = vrot.slane %v1330, %v1337
        %v1340 = vunpack.c.l.s4 1934713408
        %v1341 = vunpack.c.0.s8 %v1340
        %v1342 = vlaneseq
        %v1343 = vshrl.u32 %v1342, 7
        %v1344 = vsub.s32 %v1341, %v1343
        %v1345 = vrot.slane %v1331, %v1344
        %v1346 = vcombine.low %v1290, %v1322
        %v1347 = vcombine.high %v1290, %v1322
        %v1348 = vcombine.low %v1297, %v1329
        %v1349 = vcombine.high %v1297, %v1329
        %v1350 = vcombine.low %v1306, %v1338
        %v1351 = vcombine.high %v1306, %v1338
        %v1352 = vcombine.low %v1313, %v1345
        %v1353 = vcombine.high %v1313, %v1345
        %v1354 = vcombine.low %v427, %v435
        %v1355 = vcombine.high %v427, %v435
        %v1357 = vunpack.c.l.s4 1983009808
        %v1358 = vunpack.c.0.s8 %v1357
        %v1359 = vlaneseq
        %v1360 = vshrl.u32 %v1359, 7
        %v1361 = vsub.s32 %v1358, %v1360
        %v1362 = vrot.slane %v1354, %v1361
        %v1364 = vunpack.c.l.s4 1983009808
        %v1365 = vunpack.c.0.s8 %v1364
        %v1366 = vlaneseq
        %v1367 = vshrl.u32 %v1366, 7
        %v1368 = vsub.s32 %v1365, %v1367
        %v1369 = vrot.slane %v1355, %v1368
        %v1370 = vcombine.low %v431, %v439
        %v1371 = vcombine.high %v431, %v439
        %v1373 = vunpack.c.l.s4 1983009808
        %v1374 = vunpack.c.0.s8 %v1373
        %v1375 = vlaneseq
        %v1376 = vshrl.u32 %v1375, 7
        %v1377 = vsub.s32 %v1374, %v1376
        %v1378 = vrot.slane %v1370, %v1377
        %v1380 = vunpack.c.l.s4 1983009808
        %v1381 = vunpack.c.0.s8 %v1380
        %v1382 = vlaneseq
        %v1383 = vshrl.u32 %v1382, 7
        %v1384 = vsub.s32 %v1381, %v1383
        %v1385 = vrot.slane %v1371, %v1384
        %v1386 = vcombine.low %v457, %v467
        %v1387 = vcombine.high %v457, %v467
        %v1389 = vunpack.c.l.s4 1983009808
        %v1390 = vunpack.c.0.s8 %v1389
        %v1391 = vlaneseq
        %v1392 = vshrl.u32 %v1391, 7
        %v1393 = vsub.s32 %v1390, %v1392
        %v1394 = vrot.slane %v1386, %v1393
        %v1396 = vunpack.c.l.s4 1983009808
        %v1397 = vunpack.c.0.s8 %v1396
        %v1398 = vlaneseq
        %v1399 = vshrl.u32 %v1398, 7
        %v1400 = vsub.s32 %v1397, %v1399
        %v1401 = vrot.slane %v1387, %v1400
        %v1402 = vcombine.low %v462, %v472
        %v1403 = vcombine.high %v462, %v472
        %v1405 = vunpack.c.l.s4 1983009808
        %v1406 = vunpack.c.0.s8 %v1405
        %v1407 = vlaneseq
        %v1408 = vshrl.u32 %v1407, 7
        %v1409 = vsub.s32 %v1406, %v1408
        %v1410 = vrot.slane %v1402, %v1409
        %v1412 = vunpack.c.l.s4 1983009808
        %v1413 = vunpack.c.0.s8 %v1412
        %v1414 = vlaneseq
        %v1415 = vshrl.u32 %v1414, 7
        %v1416 = vsub.s32 %v1413, %v1415
        %v1417 = vrot.slane %v1403, %v1416
        %v1418 = vcombine.low %v1362, %v1378
        %v1419 = vcombine.high %v1362, %v1378
        %v1421 = vunpack.c.l.s4 1934713408
        %v1422 = vunpack.c.0.s8 %v1421
        %v1423 = vlaneseq
        %v1424 = vshrl.u32 %v1423, 7
        %v1425 = vsub.s32 %v1422, %v1424
        %v1426 = vrot.slane %v1418, %v1425
        %v1428 = vunpack.c.l.s4 1934713408
        %v1429 = vunpack.c.0.s8 %v1428
        %v1430 = vlaneseq
        %v1431 = vshrl.u32 %v1430, 7
        %v1432 = vsub.s32 %v1429, %v1431
        %v1433 = vrot.slane %v1419, %v1432
        %v1434 = vcombine.low %v1369, %v1385
        %v1435 = vcombine.high %v1369, %v1385
        %v1437 = vunpack.c.l.s4 1934713408
        %v1438 = vunpack.c.0.s8 %v1437
        %v1439 = vlaneseq
        %v1440 = vshrl.u32 %v1439, 7
        %v1441 = vsub.s32 %v1438, %v1440
        %v1442 = vrot.slane %v1434, %v1441
        %v1444 = vunpack.c.l.s4 1934713408
        %v1445 = vunpack.c.0.s8 %v1444
        %v1446 = vlaneseq
        %v1447 = vshrl.u32 %v1446, 7
        %v1448 = vsub.s32 %v1445, %v1447
        %v1449 = vrot.slane %v1435, %v1448
        %v1450 = vcombine.low %v1394, %v1410
        %v1451 = vcombine.high %v1394, %v1410
        %v1453 = vunpack.c.l.s4 1934713408
        %v1454 = vunpack.c.0.s8 %v1453
        %v1455 = vlaneseq
        %v1456 = vshrl.u32 %v1455, 7
        %v1457 = vsub.s32 %v1454, %v1456
        %v1458 = vrot.slane %v1450, %v1457
        %v1460 = vunpack.c.l.s4 1934713408
        %v1461 = vunpack.c.0.s8 %v1460
        %v1462 = vlaneseq
        %v1463 = vshrl.u32 %v1462, 7
        %v1464 = vsub.s32 %v1461, %v1463
        %v1465 = vrot.slane %v1451, %v1464
        %v1466 = vcombine.low %v1401, %v1417
        %v1467 = vcombine.high %v1401, %v1417
        %v1469 = vunpack.c.l.s4 1934713408
        %v1470 = vunpack.c.0.s8 %v1469
        %v1471 = vlaneseq
        %v1472 = vshrl.u32 %v1471, 7
        %v1473 = vsub.s32 %v1470, %v1472
        %v1474 = vrot.slane %v1466, %v1473
        %v1476 = vunpack.c.l.s4 1934713408
        %v1477 = vunpack.c.0.s8 %v1476
        %v1478 = vlaneseq
        %v1479 = vshrl.u32 %v1478, 7
        %v1480 = vsub.s32 %v1477, %v1479
        %v1481 = vrot.slane %v1467, %v1480
        %v1482 = vcombine.low %v1426, %v1458
        %v1483 = vcombine.high %v1426, %v1458
        %v1484 = vcombine.low %v1433, %v1465
        %v1485 = vcombine.high %v1433, %v1465
        %v1486 = vcombine.low %v1442, %v1474
        %v1487 = vcombine.high %v1442, %v1474
        %v1488 = vcombine.low %v1449, %v1481
        %v1489 = vcombine.high %v1449, %v1481
        %v1490 = vcombine.low %v484, %v492
        %v1491 = vcombine.high %v484, %v492
        %v1493 = vunpack.c.l.s4 1983009808
        %v1494 = vunpack.c.0.s8 %v1493
        %v1495 = vlaneseq
        %v1496 = vshrl.u32 %v1495, 7
        %v1497 = vsub.s32 %v1494, %v1496
        %v1498 = vrot.slane %v1490, %v1497
        %v1500 = vunpack.c.l.s4 1983009808
        %v1501 = vunpack.c.0.s8 %v1500
        %v1502 = vlaneseq
        %v1503 = vshrl.u32 %v1502, 7
        %v1504 = vsub.s32 %v1501, %v1503
        %v1505 = vrot.slane %v1491, %v1504
        %v1506 = vcombine.low %v488, %v496
        %v1507 = vcombine.high %v488, %v496
        %v1509 = vunpack.c.l.s4 1983009808
        %v1510 = vunpack.c.0.s8 %v1509
        %v1511 = vlaneseq
        %v1512 = vshrl.u32 %v1511, 7
        %v1513 = vsub.s32 %v1510, %v1512
        %v1514 = vrot.slane %v1506, %v1513
        %v1516 = vunpack.c.l.s4 1983009808
        %v1517 = vunpack.c.0.s8 %v1516
        %v1518 = vlaneseq
        %v1519 = vshrl.u32 %v1518, 7
        %v1520 = vsub.s32 %v1517, %v1519
        %v1521 = vrot.slane %v1507, %v1520
        %v1522 = vcombine.low %v508, %v516
        %v1523 = vcombine.high %v508, %v516
        %v1525 = vunpack.c.l.s4 1983009808
        %v1526 = vunpack.c.0.s8 %v1525
        %v1527 = vlaneseq
        %v1528 = vshrl.u32 %v1527, 7
        %v1529 = vsub.s32 %v1526, %v1528
        %v1530 = vrot.slane %v1522, %v1529
        %v1532 = vunpack.c.l.s4 1983009808
        %v1533 = vunpack.c.0.s8 %v1532
        %v1534 = vlaneseq
        %v1535 = vshrl.u32 %v1534, 7
        %v1536 = vsub.s32 %v1533, %v1535
        %v1537 = vrot.slane %v1523, %v1536
        %v1538 = vcombine.low %v512, %v520
        %v1539 = vcombine.high %v512, %v520
        %v1541 = vunpack.c.l.s4 1983009808
        %v1542 = vunpack.c.0.s8 %v1541
        %v1543 = vlaneseq
        %v1544 = vshrl.u32 %v1543, 7
        %v1545 = vsub.s32 %v1542, %v1544
        %v1546 = vrot.slane %v1538, %v1545
        %v1548 = vunpack.c.l.s4 1983009808
        %v1549 = vunpack.c.0.s8 %v1548
        %v1550 = vlaneseq
        %v1551 = vshrl.u32 %v1550, 7
        %v1552 = vsub.s32 %v1549, %v1551
        %v1553 = vrot.slane %v1539, %v1552
        %v1554 = vcombine.low %v1498, %v1514
        %v1555 = vcombine.high %v1498, %v1514
        %v1557 = vunpack.c.l.s4 1934713408
        %v1558 = vunpack.c.0.s8 %v1557
        %v1559 = vlaneseq
        %v1560 = vshrl.u32 %v1559, 7
        %v1561 = vsub.s32 %v1558, %v1560
        %v1562 = vrot.slane %v1554, %v1561
        %v1564 = vunpack.c.l.s4 1934713408
        %v1565 = vunpack.c.0.s8 %v1564
        %v1566 = vlaneseq
        %v1567 = vshrl.u32 %v1566, 7
        %v1568 = vsub.s32 %v1565, %v1567
        %v1569 = vrot.slane %v1555, %v1568
        %v1570 = vcombine.low %v1505, %v1521
        %v1571 = vcombine.high %v1505, %v1521
        %v1573 = vunpack.c.l.s4 1934713408
        %v1574 = vunpack.c.0.s8 %v1573
        %v1575 = vlaneseq
        %v1576 = vshrl.u32 %v1575, 7
        %v1577 = vsub.s32 %v1574, %v1576
        %v1578 = vrot.slane %v1570, %v1577
        %v1580 = vunpack.c.l.s4 1934713408
        %v1581 = vunpack.c.0.s8 %v1580
        %v1582 = vlaneseq
        %v1583 = vshrl.u32 %v1582, 7
        %v1584 = vsub.s32 %v1581, %v1583
        %v1585 = vrot.slane %v1571, %v1584
        %v1586 = vcombine.low %v1530, %v1546
        %v1587 = vcombine.high %v1530, %v1546
        %v1589 = vunpack.c.l.s4 1934713408
        %v1590 = vunpack.c.0.s8 %v1589
        %v1591 = vlaneseq
        %v1592 = vshrl.u32 %v1591, 7
        %v1593 = vsub.s32 %v1590, %v1592
        %v1594 = vrot.slane %v1586, %v1593
        %v1596 = vunpack.c.l.s4 1934713408
        %v1597 = vunpack.c.0.s8 %v1596
        %v1598 = vlaneseq
        %v1599 = vshrl.u32 %v1598, 7
        %v1600 = vsub.s32 %v1597, %v1599
        %v1601 = vrot.slane %v1587, %v1600
        %v1602 = vcombine.low %v1537, %v1553
        %v1603 = vcombine.high %v1537, %v1553
        %v1605 = vunpack.c.l.s4 1934713408
        %v1606 = vunpack.c.0.s8 %v1605
        %v1607 = vlaneseq
        %v1608 = vshrl.u32 %v1607, 7
        %v1609 = vsub.s32 %v1606, %v1608
        %v1610 = vrot.slane %v1602, %v1609
        %v1612 = vunpack.c.l.s4 1934713408
        %v1613 = vunpack.c.0.s8 %v1612
        %v1614 = vlaneseq
        %v1615 = vshrl.u32 %v1614, 7
        %v1616 = vsub.s32 %v1613, %v1615
        %v1617 = vrot.slane %v1603, %v1616
        %v1618 = vcombine.low %v1562, %v1594
        %v1619 = vcombine.high %v1562, %v1594
        %v1620 = vcombine.low %v1569, %v1601
        %v1621 = vcombine.high %v1569, %v1601
        %v1622 = vcombine.low %v1578, %v1610
        %v1623 = vcombine.high %v1578, %v1610
        %v1624 = vcombine.low %v1585, %v1617
        %v1625 = vcombine.high %v1585, %v1617
        %v1626 = vcombine.low %v534, %v544
        %v1627 = vcombine.high %v534, %v544
        %v1629 = vunpack.c.l.s4 1983009808
        %v1630 = vunpack.c.0.s8 %v1629
        %v1631 = vlaneseq
        %v1632 = vshrl.u32 %v1631, 7
        %v1633 = vsub.s32 %v1630, %v1632
        %v1634 = vrot.slane %v1626, %v1633
        %v1636 = vunpack.c.l.s4 1983009808
        %v1637 = vunpack.c.0.s8 %v1636
        %v1638 = vlaneseq
        %v1639 = vshrl.u32 %v1638, 7
        %v1640 = vsub.s32 %v1637, %v1639
        %v1641 = vrot.slane %v1627, %v1640
        %v1642 = vcombine.low %v539, %v549
        %v1643 = vcombine.high %v539, %v549
        %v1645 = vunpack.c.l.s4 1983009808
        %v1646 = vunpack.c.0.s8 %v1645
        %v1647 = vlaneseq
        %v1648 = vshrl.u32 %v1647, 7
        %v1649 = vsub.s32 %v1646, %v1648
        %v1650 = vrot.slane %v1642, %v1649
        %v1652 = vunpack.c.l.s4 1983009808
        %v1653 = vunpack.c.0.s8 %v1652
        %v1654 = vlaneseq
        %v1655 = vshrl.u32 %v1654, 7
        %v1656 = vsub.s32 %v1653, %v1655
        %v1657 = vrot.slane %v1643, %v1656
        %v1658 = vcombine.low %v561, %v569
        %v1659 = vcombine.high %v561, %v569
        %v1661 = vunpack.c.l.s4 1983009808
        %v1662 = vunpack.c.0.s8 %v1661
        %v1663 = vlaneseq
        %v1664 = vshrl.u32 %v1663, 7
        %v1665 = vsub.s32 %v1662, %v1664
        %v1666 = vrot.slane %v1658, %v1665
        %v1668 = vunpack.c.l.s4 1983009808
        %v1669 = vunpack.c.0.s8 %v1668
        %v1670 = vlaneseq
        %v1671 = vshrl.u32 %v1670, 7
        %v1672 = vsub.s32 %v1669, %v1671
        %v1673 = vrot.slane %v1659, %v1672
        %v1674 = vcombine.low %v565, %v573
        %v1675 = vcombine.high %v565, %v573
        %v1677 = vunpack.c.l.s4 1983009808
        %v1678 = vunpack.c.0.s8 %v1677
        %v1679 = vlaneseq
        %v1680 = vshrl.u32 %v1679, 7
        %v1681 = vsub.s32 %v1678, %v1680
        %v1682 = vrot.slane %v1674, %v1681
        %v1684 = vunpack.c.l.s4 1983009808
        %v1685 = vunpack.c.0.s8 %v1684
        %v1686 = vlaneseq
        %v1687 = vshrl.u32 %v1686, 7
        %v1688 = vsub.s32 %v1685, %v1687
        %v1689 = vrot.slane %v1675, %v1688
        %v1690 = vcombine.low %v1634, %v1650
        %v1691 = vcombine.high %v1634, %v1650
        %v1693 = vunpack.c.l.s4 1934713408
        %v1694 = vunpack.c.0.s8 %v1693
        %v1695 = vlaneseq
        %v1696 = vshrl.u32 %v1695, 7
        %v1697 = vsub.s32 %v1694, %v1696
        %v1698 = vrot.slane %v1690, %v1697
        %v1700 = vunpack.c.l.s4 1934713408
        %v1701 = vunpack.c.0.s8 %v1700
        %v1702 = vlaneseq
        %v1703 = vshrl.u32 %v1702, 7
        %v1704 = vsub.s32 %v1701, %v1703
        %v1705 = vrot.slane %v1691, %v1704
        %v1706 = vcombine.low %v1641, %v1657
        %v1707 = vcombine.high %v1641, %v1657
        %v1709 = vunpack.c.l.s4 1934713408
        %v1710 = vunpack.c.0.s8 %v1709
        %v1711 = vlaneseq
        %v1712 = vshrl.u32 %v1711, 7
        %v1713 = vsub.s32 %v1710, %v1712
        %v1714 = vrot.slane %v1706, %v1713
        %v1716 = vunpack.c.l.s4 1934713408
        %v1717 = vunpack.c.0.s8 %v1716
        %v1718 = vlaneseq
        %v1719 = vshrl.u32 %v1718, 7
        %v1720 = vsub.s32 %v1717, %v1719
        %v1721 = vrot.slane %v1707, %v1720
        %v1722 = vcombine.low %v1666, %v1682
        %v1723 = vcombine.high %v1666, %v1682
        %v1725 = vunpack.c.l.s4 1934713408
        %v1726 = vunpack.c.0.s8 %v1725
        %v1727 = vlaneseq
        %v1728 = vshrl.u32 %v1727, 7
        %v1729 = vsub.s32 %v1726, %v1728
        %v1730 = vrot.slane %v1722, %v1729
        %v1732 = vunpack.c.l.s4 1934713408
        %v1733 = vunpack.c.0.s8 %v1732
        %v1734 = vlaneseq
        %v1735 = vshrl.u32 %v1734, 7
        %v1736 = vsub.s32 %v1733, %v1735
        %v1737 = vrot.slane %v1723, %v1736
        %v1738 = vcombine.low %v1673, %v1689
        %v1739 = vcombine.high %v1673, %v1689
        %v1741 = vunpack.c.l.s4 1934713408
        %v1742 = vunpack.c.0.s8 %v1741
        %v1743 = vlaneseq
        %v1744 = vshrl.u32 %v1743, 7
        %v1745 = vsub.s32 %v1742, %v1744
        %v1746 = vrot.slane %v1738, %v1745
        %v1748 = vunpack.c.l.s4 1934713408
        %v1749 = vunpack.c.0.s8 %v1748
        %v1750 = vlaneseq
        %v1751 = vshrl.u32 %v1750, 7
        %v1752 = vsub.s32 %v1749, %v1751
        %v1753 = vrot.slane %v1739, %v1752
        %v1754 = vcombine.low %v1698, %v1730
        %v1755 = vcombine.high %v1698, %v1730
        %v1756 = vcombine.low %v1705, %v1737
        %v1757 = vcombine.high %v1705, %v1737
        %v1758 = vcombine.low %v1714, %v1746
        %v1759 = vcombine.high %v1714, %v1746
        %v1760 = vcombine.low %v1721, %v1753
        %v1761 = vcombine.high %v1721, %v1753
        %v1762 = vcombine.low %v585, %v593
        %v1763 = vcombine.high %v585, %v593
        %v1765 = vunpack.c.l.s4 1983009808
        %v1766 = vunpack.c.0.s8 %v1765
        %v1767 = vlaneseq
        %v1768 = vshrl.u32 %v1767, 7
        %v1769 = vsub.s32 %v1766, %v1768
        %v1770 = vrot.slane %v1762, %v1769
        %v1772 = vunpack.c.l.s4 1983009808
        %v1773 = vunpack.c.0.s8 %v1772
        %v1774 = vlaneseq
        %v1775 = vshrl.u32 %v1774, 7
        %v1776 = vsub.s32 %v1773, %v1775
        %v1777 = vrot.slane %v1763, %v1776
        %v1778 = vcombine.low %v589, %v597
        %v1779 = vcombine.high %v589, %v597
        %v1781 = vunpack.c.l.s4 1983009808
        %v1782 = vunpack.c.0.s8 %v1781
        %v1783 = vlaneseq
        %v1784 = vshrl.u32 %v1783, 7
        %v1785 = vsub.s32 %v1782, %v1784
        %v1786 = vrot.slane %v1778, %v1785
        %v1788 = vunpack.c.l.s4 1983009808
        %v1789 = vunpack.c.0.s8 %v1788
        %v1790 = vlaneseq
        %v1791 = vshrl.u32 %v1790, 7
        %v1792 = vsub.s32 %v1789, %v1791
        %v1793 = vrot.slane %v1779, %v1792
        %v1794 = vcombine.low %v1770, %v1786
        %v1795 = vcombine.high %v1770, %v1786
        %v1797 = vunpack.c.l.s4 1934713408
        %v1798 = vunpack.c.0.s8 %v1797
        %v1799 = vlaneseq
        %v1800 = vshrl.u32 %v1799, 7
        %v1801 = vsub.s32 %v1798, %v1800
        %v1802 = vrot.slane %v1794, %v1801
        %v1804 = vunpack.c.l.s4 1934713408
        %v1805 = vunpack.c.0.s8 %v1804
        %v1806 = vlaneseq
        %v1807 = vshrl.u32 %v1806, 7
        %v1808 = vsub.s32 %v1805, %v1807
        %v1809 = vrot.slane %v1795, %v1808
        %v1810 = vcombine.low %v1777, %v1793
        %v1811 = vcombine.high %v1777, %v1793
        %v1813 = vunpack.c.l.s4 1934713408
        %v1814 = vunpack.c.0.s8 %v1813
        %v1815 = vlaneseq
        %v1816 = vshrl.u32 %v1815, 7
        %v1817 = vsub.s32 %v1814, %v1816
        %v1818 = vrot.slane %v1810, %v1817
        %v1820 = vunpack.c.l.s4 1934713408
        %v1821 = vunpack.c.0.s8 %v1820
        %v1822 = vlaneseq
        %v1823 = vshrl.u32 %v1822, 7
        %v1824 = vsub.s32 %v1821, %v1823
        %v1825 = vrot.slane %v1811, %v1824
        %v1826 = vcombine.high %v1802, 0.0
        %v1827 = vcombine.high %v1809, 0.0
        %v1828 = vcombine.high %v1818, 0.0
        %v1829 = vcombine.high %v1825, 0.0
        %1835 = vrot.lane.b32.xlu0 %v735, 16
        %v1836 = vpop.permute.xlu0 %1835
        %1837 = vrot.lane.b32.xlu0 %v871, 16
        %v1838 = vpop.permute.xlu0 %1837
        %1839 = vrot.lane.b32.xlu0 %v1007, 16
        %v1840 = vpop.permute.xlu0 %1839
        %1841 = vrot.lane.b32.xlu0 %v1143, 16
        %v1842 = vpop.permute.xlu0 %1841
        %1843 = vrot.lane.b32.xlu0 %v1214, 16
        %v1844 = vpop.permute.xlu0 %1843
        %1855 = vrot.lane.b32.xlu0 %v736, 32
        %v1856 = vpop.permute.xlu0 %1855
        %1857 = vrot.lane.b32.xlu0 %v872, 32
        %v1858 = vpop.permute.xlu0 %1857
        %1859 = vrot.lane.b32.xlu0 %v1008, 32
        %v1860 = vpop.permute.xlu0 %1859
        %1861 = vrot.lane.b32.xlu0 %v1144, 32
        %v1862 = vpop.permute.xlu0 %1861
        %1863 = vrot.lane.b32.xlu0 %v1197, 32
        %v1864 = vpop.permute.xlu0 %1863
        %1875 = vrot.lane.b32.xlu0 %v737, 48
        %v1876 = vpop.permute.xlu0 %1875
        %1877 = vrot.lane.b32.xlu0 %v873, 48
        %v1878 = vpop.permute.xlu0 %1877
        %1879 = vrot.lane.b32.xlu0 %v1009, 48
        %v1880 = vpop.permute.xlu0 %1879
        %1881 = vrot.lane.b32.xlu0 %v1145, 48
        %v1882 = vpop.permute.xlu0 %1881
        %1883 = vrot.lane.b32.xlu0 %v1215, 48
        %v1884 = vpop.permute.xlu0 %1883
        %1895 = vrot.lane.b32.xlu0 %v738, 64
        %v1896 = vpop.permute.xlu0 %1895
        %1897 = vrot.lane.b32.xlu0 %v874, 64
        %v1898 = vpop.permute.xlu0 %1897
        %1899 = vrot.lane.b32.xlu0 %v1010, 64
        %v1900 = vpop.permute.xlu0 %1899
        %1901 = vrot.lane.b32.xlu0 %v1146, 64
        %v1902 = vpop.permute.xlu0 %1901
        %1903 = vrot.lane.b32.xlu0 %v1206, 64
        %v1904 = vpop.permute.xlu0 %1903
        %1915 = vrot.lane.b32.xlu0 %v739, 80
        %v1916 = vpop.permute.xlu0 %1915
        %1917 = vrot.lane.b32.xlu0 %v875, 80
        %v1918 = vpop.permute.xlu0 %1917
        %1919 = vrot.lane.b32.xlu0 %v1011, 80
        %v1920 = vpop.permute.xlu0 %1919
        %1921 = vrot.lane.b32.xlu0 %v1147, 80
        %v1922 = vpop.permute.xlu0 %1921
        %1923 = vrot.lane.b32.xlu0 %v1216, 80
        %v1924 = vpop.permute.xlu0 %1923
        %1935 = vrot.lane.b32.xlu0 %v740, 96
        %v1936 = vpop.permute.xlu0 %1935
        %1937 = vrot.lane.b32.xlu0 %v876, 96
        %v1938 = vpop.permute.xlu0 %1937
        %1939 = vrot.lane.b32.xlu0 %v1012, 96
        %v1940 = vpop.permute.xlu0 %1939
        %1941 = vrot.lane.b32.xlu0 %v1148, 96
        %v1942 = vpop.permute.xlu0 %1941
        %1943 = vrot.lane.b32.xlu0 %v1213, 96
        %v1944 = vpop.permute.xlu0 %1943
        %1955 = vrot.lane.b32.xlu0 %v741, 112
        %v1956 = vpop.permute.xlu0 %1955
        %1957 = vrot.lane.b32.xlu0 %v877, 112
        %v1958 = vpop.permute.xlu0 %1957
        %1959 = vrot.lane.b32.xlu0 %v1013, 112
        %v1960 = vpop.permute.xlu0 %1959
        %1961 = vrot.lane.b32.xlu0 %v1149, 112
        %v1962 = vpop.permute.xlu0 %1961
        %1963 = vrot.lane.b32.xlu0 %v1217, 112
        %v1964 = vpop.permute.xlu0 %1963
        %1975 = vrot.lane.b32.xlu0 %v1347, 16
        %v1976 = vpop.permute.xlu0 %1975
        %1977 = vrot.lane.b32.xlu0 %v1483, 16
        %v1978 = vpop.permute.xlu0 %1977
        %1979 = vrot.lane.b32.xlu0 %v1619, 16
        %v1980 = vpop.permute.xlu0 %1979
        %1981 = vrot.lane.b32.xlu0 %v1755, 16
        %v1982 = vpop.permute.xlu0 %1981
        %1983 = vrot.lane.b32.xlu0 %v1826, 16
        %v1984 = vpop.permute.xlu0 %1983
        %1995 = vrot.lane.b32.xlu0 %v1348, 32
        %v1996 = vpop.permute.xlu0 %1995
        %1997 = vrot.lane.b32.xlu0 %v1484, 32
        %v1998 = vpop.permute.xlu0 %1997
        %1999 = vrot.lane.b32.xlu0 %v1620, 32
        %v2000 = vpop.permute.xlu0 %1999
        %2001 = vrot.lane.b32.xlu0 %v1756, 32
        %v2002 = vpop.permute.xlu0 %2001
        %2003 = vrot.lane.b32.xlu0 %v1809, 32
        %v2004 = vpop.permute.xlu0 %2003
        %2015 = vrot.lane.b32.xlu0 %v1349, 48
        %v2016 = vpop.permute.xlu0 %2015
        %2017 = vrot.lane.b32.xlu0 %v1485, 48
        %v2018 = vpop.permute.xlu0 %2017
        %2019 = vrot.lane.b32.xlu0 %v1621, 48
        %v2020 = vpop.permute.xlu0 %2019
        %2021 = vrot.lane.b32.xlu0 %v1757, 48
        %v2022 = vpop.permute.xlu0 %2021
        %2023 = vrot.lane.b32.xlu0 %v1827, 48
        %v2024 = vpop.permute.xlu0 %2023
        %2035 = vrot.lane.b32.xlu0 %v1350, 64
        %v2036 = vpop.permute.xlu0 %2035
        %2037 = vrot.lane.b32.xlu0 %v1486, 64
        %v2038 = vpop.permute.xlu0 %2037
        %2039 = vrot.lane.b32.xlu0 %v1622, 64
        %v2040 = vpop.permute.xlu0 %2039
        %2041 = vrot.lane.b32.xlu0 %v1758, 64
        %v2042 = vpop.permute.xlu0 %2041
        %2043 = vrot.lane.b32.xlu0 %v1818, 64
        %v2044 = vpop.permute.xlu0 %2043
        %2055 = vrot.lane.b32.xlu0 %v1351, 80
        %v2056 = vpop.permute.xlu0 %2055
        %2057 = vrot.lane.b32.xlu0 %v1487, 80
        %v2058 = vpop.permute.xlu0 %2057
        %2059 = vrot.lane.b32.xlu0 %v1623, 80
        %v2060 = vpop.permute.xlu0 %2059
        %2061 = vrot.lane.b32.xlu0 %v1759, 80
        %v2062 = vpop.permute.xlu0 %2061
        %2063 = vrot.lane.b32.xlu0 %v1828, 80
        %v2064 = vpop.permute.xlu0 %2063
        %2075 = vrot.lane.b32.xlu0 %v1352, 96
        %v2076 = vpop.permute.xlu0 %2075
        %2077 = vrot.lane.b32.xlu0 %v1488, 96
        %v2078 = vpop.permute.xlu0 %2077
        %2079 = vrot.lane.b32.xlu0 %v1624, 96
        %v2080 = vpop.permute.xlu0 %2079
        %2081 = vrot.lane.b32.xlu0 %v1760, 96
        %v2082 = vpop.permute.xlu0 %2081
        %2083 = vrot.lane.b32.xlu0 %v1825, 96
        %v2084 = vpop.permute.xlu0 %2083
        %2095 = vrot.lane.b32.xlu0 %v1353, 112
        %v2096 = vpop.permute.xlu0 %2095
        %2097 = vrot.lane.b32.xlu0 %v1489, 112
        %v2098 = vpop.permute.xlu0 %2097
        %2099 = vrot.lane.b32.xlu0 %v1625, 112
        %v2100 = vpop.permute.xlu0 %2099
        %2101 = vrot.lane.b32.xlu0 %v1761, 112
        %v2102 = vpop.permute.xlu0 %2101
        %2103 = vrot.lane.b32.xlu0 %v1829, 112
        %v2104 = vpop.permute.xlu0 %2103
        %vm2110 = vcmask 130048
        %v2111 = vsel %vm2110, %v734, %v1836
        %v2112 = vsel %vm2110, %v870, %v1838
        %v2113 = vsel %vm2110, %v1006, %v1840
        %v2114 = vsel %vm2110, %v1142, %v1842
        %v2115 = vsel %vm2110, %v1190, %v1844
        %vm2116 = vcmask 261120
        %v2117 = vsel %vm2116, %v2111, %v1856
        %v2118 = vsel %vm2116, %v2112, %v1858
        %v2119 = vsel %vm2116, %v2113, %v1860
        %v2120 = vsel %vm2116, %v2114, %v1862
        %v2121 = vsel %vm2116, %v2115, %v1864
        %vm2122 = vcmask 392192
        %v2123 = vsel %vm2122, %v2117, %v1876
        %v2124 = vsel %vm2122, %v2118, %v1878
        %v2125 = vsel %vm2122, %v2119, %v1880
        %v2126 = vsel %vm2122, %v2120, %v1882
        %v2127 = vsel %vm2122, %v2121, %v1884
        %vm2128 = vcmask 523264
        %v2129 = vsel %vm2128, %v2123, %v1896
        %v2130 = vsel %vm2128, %v2124, %v1898
        %v2131 = vsel %vm2128, %v2125, %v1900
        %v2132 = vsel %vm2128, %v2126, %v1902
        %v2133 = vsel %vm2128, %v2127, %v1904
        %vm2134 = vcmask 654336
        %v2135 = vsel %vm2134, %v2129, %v1916
        %v2136 = vsel %vm2134, %v2130, %v1918
        %v2137 = vsel %vm2134, %v2131, %v1920
        %v2138 = vsel %vm2134, %v2132, %v1922
        %v2139 = vsel %vm2134, %v2133, %v1924
        %vm2140 = vcmask 785408
        %v2141 = vsel %vm2140, %v2135, %v1936
        %v2142 = vsel %vm2140, %v2136, %v1938
        %v2143 = vsel %vm2140, %v2137, %v1940
        %v2144 = vsel %vm2140, %v2138, %v1942
        %v2145 = vsel %vm2140, %v2139, %v1944
        %vm2146 = vcmask 916480
        %v2147 = vsel %vm2146, %v2141, %v1956
        %v2148 = vsel %vm2146, %v2142, %v1958
        %v2149 = vsel %vm2146, %v2143, %v1960
        %v2150 = vsel %vm2146, %v2144, %v1962
        %v2151 = vsel %vm2146, %v2145, %v1964
        %v2152 = vsel %vm2110, %v1346, %v1976
        %v2153 = vsel %vm2110, %v1482, %v1978
        %v2154 = vsel %vm2110, %v1618, %v1980
        %v2155 = vsel %vm2110, %v1754, %v1982
        %v2156 = vsel %vm2110, %v1802, %v1984
        %v2157 = vsel %vm2116, %v2152, %v1996
        %v2158 = vsel %vm2116, %v2153, %v1998
        %v2159 = vsel %vm2116, %v2154, %v2000
        %v2160 = vsel %vm2116, %v2155, %v2002
        %v2161 = vsel %vm2116, %v2156, %v2004
        %v2162 = vsel %vm2122, %v2157, %v2016
        %v2163 = vsel %vm2122, %v2158, %v2018
        %v2164 = vsel %vm2122, %v2159, %v2020
        %v2165 = vsel %vm2122, %v2160, %v2022
        %v2166 = vsel %vm2122, %v2161, %v2024
        %v2167 = vsel %vm2128, %v2162, %v2036
        %v2168 = vsel %vm2128, %v2163, %v2038
        %v2169 = vsel %vm2128, %v2164, %v2040
        %v2170 = vsel %vm2128, %v2165, %v2042
        %v2171 = vsel %vm2128, %v2166, %v2044
        %v2172 = vsel %vm2134, %v2167, %v2056
        %v2173 = vsel %vm2134, %v2168, %v2058
        %v2174 = vsel %vm2134, %v2169, %v2060
        %v2175 = vsel %vm2134, %v2170, %v2062
        %v2176 = vsel %vm2134, %v2171, %v2064
        %v2177 = vsel %vm2140, %v2172, %v2076
        %v2178 = vsel %vm2140, %v2173, %v2078
        %v2179 = vsel %vm2140, %v2174, %v2080
        %v2180 = vsel %vm2140, %v2175, %v2082
        %v2181 = vsel %vm2140, %v2176, %v2084
        %v2182 = vsel %vm2146, %v2177, %v2096
        %v2183 = vsel %vm2146, %v2178, %v2098
        %v2184 = vsel %vm2146, %v2179, %v2100
        %v2185 = vsel %vm2146, %v2180, %v2102
        %v2186 = vsel %vm2146, %v2181, %v2104
        %v2187 = vld [vmem:[%s1] sm:$0xff]
        %v2188 = vld [vmem:[%s2] sm:$0xff]
        %2190 = vset.pattern.permute.xlu0 0
        %2191 = vperm.xlu0 %2190, %v2188
        %v2192 = vpop.permute.xlu0 %2191
        %vm2194 = vcmask 293888
        %v2196 = vsel %vm2194, %v2187, 0
        %vm2198 = vcmask 1043456
        %v2200 = vsel %vm2198, %v2151, 0
        %v2203 = vsel %vm2198, %v2186, 0
        %2205 = vmatprep.subr.mxu0 %v2182
        %2206 = vmatpush1.msra.mxu0 %v2147
        %2207 = vmatprep.subr.mxu0 %v2183
        %2208 = vmatpush1.msra.mxu0 %v2148
        %2209 = vmatprep.subr.mxu0 %v2184
        %2210 = vmatpush1.msra.mxu0 %v2149
        %2211 = vmatprep.subr.mxu0 %v2185
        %2212 = vmatpush1.msra.mxu0 %v2150
        %2213 = vmatprep.subr.mxu0 %v2203
        %2214 = vmatpush1.msra.mxu0 %v2200
        %2215 = vmatprep.subr.mxu0 0.0
        %2216 = vmatpush1.msra.mxu0 0.0
        %2217 = vmatprep.subr.mxu0 0.0
        %2218 = vmatpush1.msra.mxu0 0.0
        %2219 = vmatprep.subr.mxu0 0.0
        %2220 = vmatpush1.msra.mxu0 0.0
        %2221 = vmatprep.subr.mxu0 0.0
        %2222 = vmatpush1.msra.mxu0 0.0
        %2223 = vmatprep.subr.mxu0 0.0
        %2224 = vmatpush1.msra.mxu0 0.0
        %2225 = vmatprep.subr.mxu0 0.0
        %2226 = vmatpush1.msra.mxu0 0.0
        %2227 = vmatprep.subr.mxu0 0.0
        %2228 = vmatpush1.msra.mxu0 0.0
        %2229 = vmatprep.subr.mxu0 0.0
        %2230 = vmatpush1.msra.mxu0 0.0
        %2231 = vmatprep.subr.mxu0 0.0
        %2232 = vmatpush1.msra.mxu0 0.0
        %2233 = vmatprep.subr.mxu0 0.0
        %2234 = vmatpush1.msra.mxu0 0.0
        %2235 = vmatprep.subr.mxu0 0.0
        %2236 = vmatpush1.msra.mxu0 0.0
        %2237 = vmatprep.subr.mxu0 0.0
        %2238 = vmatpush1.msra.mxu0 0.0
        %2239 = vmatprep.subr.mxu0 0.0
        %2240 = vmatpush1.msra.mxu0 0.0
        %2241 = vmatprep.subr.mxu0 0.0
        %2242 = vmatpush1.msra.mxu0 0.0
        %2243 = vmatprep.subr.mxu0 0.0
        %2244 = vmatpush1.msra.mxu0 0.0
        %2245 = vmatprep.subr.mxu0 0.0
        %2246 = vmatpush1.msra.mxu0 0.0
        %2247 = vmatprep.subr.mxu0 0.0
        %2248 = vmatpush1.msra.mxu0 0.0
        %2249 = vmatprep.subr.mxu0 0.0
        %2250 = vmatpush1.msra.mxu0 0.0
        %2251 = vmatprep.subr.mxu0 0.0
        %2252 = vmatpush1.msra.mxu0 0.0
        %2253 = vmatprep.subr.mxu0 0.0
        %2254 = vmatpush1.msra.mxu0 0.0
        %2255 = vmatprep.subr.mxu0 0.0
        %2256 = vmatpush1.msra.mxu0 0.0
        %2257 = vmatprep.subr.mxu0 0.0
        %2258 = vmatpush1.msra.mxu0 0.0
        %2259 = vmatprep.subr.mxu0 0.0
        %2260 = vmatpush1.msra.mxu0 0.0
        %2261 = vmatprep.subr.mxu0 0.0
        %2262 = vmatpush1.msra.mxu0 0.0
        %2263 = vmatprep.subr.mxu0 0.0
        %2264 = vmatpush1.msra.mxu0 0.0
        %2265 = vmatprep.subr.mxu0 0.0
        %2266 = vmatpush1.msra.mxu0 0.0
        %2267 = vmatprep.subr.mxu0 0.0
        %2268 = vmatpush1.msra.mxu0 0.0
        %2269 = vmatprep.mubr.f32.mxu0 0.0
        %2270 = vmatmul.mubr.f32.gmra.mrb[0].mxu0 %v2196
        %v2271 = vpop.f32.mrb[0].mxu0
        %v2272 = vadd.f32 %v2192, %v2271
        %v2273 = vpop.f32.mrb[0].mxu0
        %v2274 = vadd.f32 %v2192, %v2273
        %2275 = vdwg.mxu0
        %2276 = vst [vmem:[%s188] sm:$0xff] %v2272
        %2277 = vst [vmem:[%s188 + $0x8] sm:$0xff] %v2274
        %s2278 = sand.u32 %s96, 1
        %s2279 = scalar_lea.sflag [#allocation4], %s2278
        %s2280 = sand.u32 %s96, 1
        %s2281 = smul.addr %s2280, 16
        %s2282 = scalar_lea.vmem [#allocation5], %s2281
        // Predicated region
        $region37: #{tpu_custom_call.1} parent=31 // pred_check
          %p2283 = pneg %p106
        $region38: #{tpu_custom_call.1} parent=31 // pred_check_branch
          %2285 = sbr.rel (%p2283) target = $region40
        $region39: #{tpu_custom_call.1} parent=31 // pred_region
          %s2287 = ssub.s32 256, 256
          %2288 = vsyncadd %s2279, %s2287
          %s2289 = smul.addr %s20, 2
          %s2290 = smul.addr %s2289, 128
          %s2291 = scalar_lea.hbm %s3, %s2290
          %s2293 = sshll.u32 %s2282, 4
          %s2294 = int_to_ptr.vmem [resolvable:$true] %s2293
          %2296 = dma.vmem_to_hbm [thread:$0]  %s2294, 256, %s2291, %s2279
        $region40: #{tpu_custom_call.1} parent=31 // pred_fallthru
          _
      $region32: #{tpu_custom_call.1} parent=5 // pred_fallthru
        _
      %p2297 = scmp.le.s32.totalorder 2, %s15
      // Predicated region
      $region41: #{tpu_custom_call.1} parent=5 // pred_check
        %p2298 = pneg %p2297
      $region42: #{tpu_custom_call.1} parent=5 // pred_check_branch
        %2300 = sbr.rel (%p2298) target = $region44
      $region43: #{tpu_custom_call.1} parent=5 // pred_region
        %s2301 = ssub.s32 %s15, 2
        // Predicated region
        $region45: #{tpu_custom_call.1} parent=43 // pred_check
          %p2302 = pneg %p112
        $region46: #{tpu_custom_call.1} parent=43 // pred_check_branch
          %2304 = sbr.rel (%p2302) target = $region48
        $region47: #{tpu_custom_call.1} parent=43 // pred_region
          %s2305 = sand.u32 %s97, 1
          %s2306 = scalar_lea.sflag [#allocation4], %s2305
          %s2307 = sand.u32 %s97, 1
          %s2308 = smul.addr %s2307, 16
          %s2309 = scalar_lea.vmem [#allocation5], %s2308
          %2310 = dma.done %s2306, 256
        $region48: #{tpu_custom_call.1} parent=43 // pred_fallthru
          _
      $region44: #{tpu_custom_call.1} parent=5 // pred_fallthru
        _
    $region6: #{tpu_custom_call.1} parent=1 // loop_footer
      %s19 = sadd.s32 1, %s15
    $region7: #{tpu_custom_call.1} parent=1 // loop_footer_branch
      %14 = sbr.rel target = $region3
    $region8: #{tpu_custom_call.1} parent=1 // loop_exit
      _
    %2311 = vsyncpa [#allocation3], 1
    %s2312 = scalar_lea.sflag [#allocation3], 1
    %2313 = vsyncpa %s2312, 1
    %2314 = vsyncpa [#allocation4], 1
    %s2315 = scalar_lea.sflag [#allocation4], 1
    %2316 = vsyncpa %s2315, 1

</llo_original>
